<compile_context>
chip_gen: v7x
topology: tpu7x:2x2x1
jax: 0.10.0
libtpu: 0.0.40
codegen_flags: <defaults>
</compile_context>

<pallas_src>
import functools

import jax
import jax.numpy as jnp
from jax.experimental import pallas as pl
from jax.experimental.pallas import tpu as pltpu


def _round_up(v, mult):
    return ((v + mult - 1) // mult) * mult


# ----------------------------------------------------------------------------
# Pallas kernel: full packed-MLP forward on one batch tile.
# ----------------------------------------------------------------------------
def _make_mlp_kernel(num_layers, use_sigmoid, compute_dtype, approx_sigmoid):
    def kernel(x_ref, *refs):
        # refs = (w0, b0, w1, b1, ..., w_{L-1}, b_{L-1}, out)
        o_ref = refs[-1]
        wb = refs[:-1]
        h = x_ref[...].astype(compute_dtype)
        for li in range(num_layers):
            w = wb[2 * li][...]          # (in_p, out_p) compute_dtype
            b = wb[2 * li + 1][...]      # (1, out_p) fp32
            z = jnp.dot(h, w, preferred_element_type=jnp.float32) + b
            if li < num_layers - 1:
                # LeakyReLU(0.2) in fp32 (VPU has no bf16 on v5e);
                # Dropout(0.2) is identity in eval mode.
                a = jnp.where(z > 0, z, 0.2 * z)
                h = a.astype(compute_dtype)
            else:
                # Lane-dense output: only column 0 of z holds real logits
                # (the final Linear has out=1, zero-padded to 128).  Transpose
                # (tile_m, 128) -> (128, tile_m) on the XLU (slack slot) and
                # keep row 0, so the HBM writeback is 4 B/row instead of 512.
                zt = z.T                              # (out_p, tile_m) fp32
                row = zt[0:1, :]                      # (1, tile_m) real logits
                if use_sigmoid:
                    # sigmoid = 1 / (1 + exp(-z)); exp on the EUP.  approx
                    # reciprocal (also EUP) on the bf16 path, exact on fp32.
                    row = pl.reciprocal(1.0 + jnp.exp(-row), approx=approx_sigmoid)
                o_ref[...] = row.astype(o_ref.dtype)

    return kernel


def discriminator_forward(
    x,
    params,
    *,
    pack,
    use_sigmoid,
    tile_m=512,
    compute_dtype=jnp.bfloat16,
    single_buffer_weights=True,
    batch_core_parallel=False,
):
    """x: (batch, input_dim) float32.  params: list of (W_t, b) with W_t (in, out).

    Returns (batch // pack, 1) float32 discriminator scores.
    """
    batch, input_dim = x.shape
    assert batch % pack == 0, "Input batch size must be divisible by pack size"
    packdim = input_dim * pack
    xp = x.reshape(batch // pack, packdim)          # .view(-1, packdim)
    m = xp.shape[0]

    num_layers = len(params)
    out_dim = params[-1][0].shape[1]
    assert out_dim == 1, "Discriminator final layer must have out_features == 1"

    # ---- zero-pad every feature dim to a lane multiple (128) ---------------
    # Exact: padded columns stay 0 through LeakyReLU and feed zero rows of the
    # next weight.  (Padding to 256 on v6e/v7x would fill the 2x256 MXU, but
    # these configs are HBM-bound, so the idle MXU columns are free filler.)
    packdim_p = _round_up(packdim, 128)
    padded = []
    in_dim_p = packdim_p
    for (w_t, b) in params:
        din, dout = w_t.shape
        dout_p = _round_up(dout, 128)
        w_p = (
            jnp.zeros((in_dim_p, dout_p), compute_dtype)
            .at[:din, :dout]
            .set(w_t.astype(compute_dtype))
        )
        b_p = jnp.zeros((1, dout_p), jnp.float32).at[:, :dout].set(b)
        padded.append((w_p, b_p))
        in_dim_p = dout_p
    out_dim_p = padded[-1][0].shape[1]
    del out_dim_p  # only column 0 is written (lane-dense transposed output)

    # ---- batch tiling: tile_m is a multiple of 128, clamped to the batch ---
    tile_m = _round_up(max(1, min(tile_m, m)), 128)
    m_p = _round_up(m, tile_m)
    grid_m = m_p // tile_m

    # ---- input: avoid a wrapper-side HBM round trip when already aligned ----
    needs_pad = (packdim_p != packdim) or (m_p != m)
    if needs_pad:
        # TODO(synk): try CompilerParams(allow_input_fusion) to fuse this pad
        # into the pallas_call prologue instead of a standalone HBM pass.
        x_in = (
            jnp.zeros((m_p, packdim_p), compute_dtype)
            .at[:m, :packdim]
            .set(xp.astype(compute_dtype))
        )
    else:
        x_in = xp  # stream fp32 directly; kernel casts to compute_dtype

    kernel = _make_mlp_kernel(
        num_layers,
        use_sigmoid,
        compute_dtype,
        approx_sigmoid=(compute_dtype != jnp.float32),
    )

    # ---- BlockSpecs ---------------------------------------------------------
    in_specs = [pl.BlockSpec((tile_m, packdim_p), lambda i: (i, 0))]
    flat_params = []
    for (w_p, b_p) in padded:
        if single_buffer_weights:
            # Constant-index blocks are DMA'd once; a second buffer is pure
            # VMEM waste (critical on v7x's 64 MiB).
            w_spec = pl.BlockSpec(
                w_p.shape, lambda i: (0, 0), pipeline_mode=pl.Buffered(buffer_count=1)
            )
            b_spec = pl.BlockSpec(
                b_p.shape, lambda i: (0, 0), pipeline_mode=pl.Buffered(buffer_count=1)
            )
        else:
            w_spec = pl.BlockSpec(w_p.shape, lambda i: (0, 0))
            b_spec = pl.BlockSpec(b_p.shape, lambda i: (0, 0))
        in_specs.append(w_spec)
        in_specs.append(b_spec)
        flat_params.extend([w_p, b_p])

    # Lane-dense transposed output: (1, m_p) fp32, block (1, tile_m).
    out_specs = pl.BlockSpec((1, tile_m), lambda i: (0, i))

    # ---- VMEM budget (hardware-aware cap, no double counting) ---------------
    x_tile_bytes = tile_m * packdim_p * jnp.dtype(x_in.dtype).itemsize
    out_tile_bytes = tile_m * 4
    wb_bytes = sum(int(a.size) * a.dtype.itemsize for a in flat_params)
    wb_factor = 1 if single_buffer_weights else 2
    max_feat = max([packdim_p] + [w.shape[1] for (w, _) in padded])
    act_bytes = 4 * tile_m * max_feat * 4          # live-intermediate slack
    est = 2 * x_tile_bytes + 2 * out_tile_bytes + wb_factor * wb_bytes + act_bytes
    try:
        vmem_cap = int(pltpu.get_tpu_info().vmem_capacity_bytes)
    except Exception:
        vmem_cap = 64 * 2**20                      # conservative v7x floor
    vmem_limit = int(min(0.9 * vmem_cap, max(32 * 2**20, 1.5 * est)))

    if batch_core_parallel:
        # Explicit 2-TensorCore sharding of the batch axis on v7x.
        dims = (pltpu.CORE_PARALLEL,)
    else:
        dims = ("parallel",)

    fn = pl.pallas_call(
        kernel,
        out_shape=jax.ShapeDtypeStruct((1, m_p), jnp.float32),
        grid_spec=pltpu.PrefetchScalarGridSpec(
            num_scalar_prefetch=0,
            grid=(grid_m,),
            in_specs=in_specs,
            out_specs=out_specs,
        ),
        compiler_params=pltpu.CompilerParams(
            dimension_semantics=dims,
            vmem_limit_bytes=vmem_limit,
        ),
    )
    out_padded = fn(x_in, *flat_params)
    return out_padded[0, :m][:, None]


# ----------------------------------------------------------------------------
# Deterministic parameter construction (xavier_uniform + zero bias + spectral
# normalization), done in plain JAX as setup glue.
# ----------------------------------------------------------------------------
def _xavier_uniform(key, out_features, in_features):
    bound = jnp.sqrt(6.0 / (in_features + out_features))
    return jax.random.uniform(
        key, (out_features, in_features), jnp.float32, -bound, bound
    )


def build_params(key, input_dim, dis_dims, pack):
    """Returns list of (W_t, b): W_t is spectrally-normalized, transposed to (in, out)."""
    dims_in_out = []
    dim = input_dim * pack
    for item in dis_dims:
        dims_in_out.append((dim, item))
        dim = item
    dims_in_out.append((dim, 128))
    dims_in_out.append((128, 1))

    params = []
    for (din, dout) in dims_in_out:
        key, sub = jax.random.split(key)
        w = _xavier_uniform(sub, dout, din)            # torch Linear layout (out, in)
        sigma = jnp.linalg.norm(w, ord=2)              # spectral norm (largest s.v.)
        w_sn = w / sigma
        params.append((jnp.transpose(w_sn), jnp.zeros((1, dout), jnp.float32)))
    return params


# Pure-JAX reference for correctness checking.
def reference_forward(x, params, *, pack, use_sigmoid):
    batch, input_dim = x.shape
    h = x.reshape(batch // pack, input_dim * pack)
    n = len(params)
    for li, (w_t, b) in enumerate(params):
        h = h @ w_t + b
        if li < n - 1:
            h = jnp.where(h > 0, h, 0.2 * h)
    if use_sigmoid:
        h = 1.0 / (1.0 + jnp.exp(-h))
    return h


if __name__ == "__main__":
    # Small config consistent with the module.
    input_dim = 16
    pack = 2
    dis_dims = (64, 32)
    loss = "cross_entropy"          # -> Sigmoid appended
    use_sigmoid = loss == "cross_entropy"
    batch = 32                      # divisible by pack; 16 packed rows

    key = jax.random.PRNGKey(0)
    key_x, key_p = jax.random.split(key)
    x = jax.random.normal(key_x, (batch, input_dim), jnp.float32)
    params = build_params(key_p, input_dim, dis_dims, pack)
    ref = reference_forward(x, params, pack=pack, use_sigmoid=use_sigmoid)

    def make_fwd(compute_dtype, sbw):
        return jax.jit(
            functools.partial(
                discriminator_forward,
                pack=pack,
                use_sigmoid=use_sigmoid,
                tile_m=512,
                compute_dtype=compute_dtype,
                single_buffer_weights=sbw,
            )
        )

    # 1) fp32 path — tight numerical check, and probe whether this JAX build
    #    accepts pl.Buffered(buffer_count=1) single-buffering; fall back to
    #    default double-buffering of the (small) weight blocks if not.
    single_buffer = True
    try:
        out_f32 = jax.block_until_ready(make_fwd(jnp.float32, True)(x, params))
    except Exception:
        single_buffer = False
        out_f32 = jax.block_until_ready(make_fwd(jnp.float32, False)(x, params))
    assert out_f32.shape == (batch // pack, 1), out_f32.shape
    assert jnp.allclose(out_f32, ref, atol=1e-5, rtol=1e-5), "fp32 mismatch vs reference"

    # 2) bf16 MXU path (fp32 accumulation, approx-reciprocal sigmoid).
    fwd_bf16 = make_fwd(jnp.bfloat16, single_buffer)
    out_bf16 = jax.block_until_ready(fwd_bf16(x, params))
    assert out_bf16.shape == (batch // pack, 1), out_bf16.shape
    assert jnp.allclose(out_bf16, ref, atol=2e-2, rtol=2e-2), "bf16 mismatch vs reference"

    # 3) ragged packed-batch (exercises zero-pad copy path / tile clamping).
    x2 = jax.random.normal(jax.random.PRNGKey(1), (40, input_dim), jnp.float32)
    ref2 = reference_forward(x2, params, pack=pack, use_sigmoid=use_sigmoid)
    out2 = jax.block_until_ready(fwd_bf16(x2, params))
    assert out2.shape == (40 // pack, 1), out2.shape
    assert jnp.allclose(out2, ref2, atol=2e-2, rtol=2e-2), "ragged mismatch vs reference"

    # 4) lane/row-aligned config (packdim % 128 == 0, m % tile_m == 0):
    #    exercises the zero-copy fp32 streaming path (no wrapper pad/cast).
    input_dim_a, batch_a = 64, 256                    # packdim = 128, m = 128
    params_a = build_params(jax.random.PRNGKey(2), input_dim_a, dis_dims, pack)
    x3 = jax.random.normal(jax.random.PRNGKey(3), (batch_a, input_dim_a), jnp.float32)
    ref3 = reference_forward(x3, params_a, pack=pack, use_sigmoid=use_sigmoid)
    out3 = jax.block_until_ready(fwd_bf16(x3, params_a))
    assert out3.shape == (batch_a // pack, 1), out3.shape
    assert jnp.allclose(out3, ref3, atol=2e-2, rtol=2e-2), "aligned mismatch vs reference"

    print("KERNEL_OK")
</pallas_src>

<mosaic_0001>
module attributes {stable_mosaic.version = 11 : i64} {
  func.func @kernel(%arg0: i32, %arg1: memref<128x128xf32, #tpu.memory_space<vmem>>, %arg2: memref<128x128xf32, #tpu.memory_space<vmem>>, %arg3: memref<1x128xf32, #tpu.memory_space<vmem>>, %arg4: memref<128x128xf32, #tpu.memory_space<vmem>>, %arg5: memref<1x128xf32, #tpu.memory_space<vmem>>, %arg6: memref<128x128xf32, #tpu.memory_space<vmem>>, %arg7: memref<1x128xf32, #tpu.memory_space<vmem>>, %arg8: memref<128x128xf32, #tpu.memory_space<vmem>>, %arg9: memref<1x128xf32, #tpu.memory_space<vmem>>, %arg10: memref<1x128xf32, #tpu.memory_space<vmem>>) attributes {dimension_semantics = [#tpu.dimension_semantics<parallel>], iteration_bounds = array<i64: 1>, scalar_prefetch = 0 : i64, scratch_operands = 0 : i64, tpu.core_type = #tpu.core_type<tc>, window_params = [{transform_indices = @transform_0, window_bounds = array<i64: 128, 128>}, {pipeline_mode = #tpu.pipeline_mode<synchronous>, transform_indices = @transform_1, window_bounds = array<i64: 128, 128>}, {pipeline_mode = #tpu.pipeline_mode<synchronous>, transform_indices = @transform_2, window_bounds = array<i64: 1, 128>}, {pipeline_mode = #tpu.pipeline_mode<synchronous>, transform_indices = @transform_3, window_bounds = array<i64: 128, 128>}, {pipeline_mode = #tpu.pipeline_mode<synchronous>, transform_indices = @transform_4, window_bounds = array<i64: 1, 128>}, {pipeline_mode = #tpu.pipeline_mode<synchronous>, transform_indices = @transform_5, window_bounds = array<i64: 128, 128>}, {pipeline_mode = #tpu.pipeline_mode<synchronous>, transform_indices = @transform_6, window_bounds = array<i64: 1, 128>}, {pipeline_mode = #tpu.pipeline_mode<synchronous>, transform_indices = @transform_7, window_bounds = array<i64: 128, 128>}, {pipeline_mode = #tpu.pipeline_mode<synchronous>, transform_indices = @transform_8, window_bounds = array<i64: 1, 128>}, {transform_indices = @transform_9, window_bounds = array<i64: 1, 128>}]} {
    %c0 = arith.constant 0 : index
    %c0_0 = arith.constant 0 : index
    %0 = vector.load %arg1[%c0, %c0_0] : memref<128x128xf32, #tpu.memory_space<vmem>>, vector<128x128xf32>
    %c0_1 = arith.constant 0 : index
    %c0_2 = arith.constant 0 : index
    %1 = vector.load %arg2[%c0_1, %c0_2] : memref<128x128xf32, #tpu.memory_space<vmem>>, vector<128x128xf32>
    %c0_3 = arith.constant 0 : index
    %c0_4 = arith.constant 0 : index
    %2 = vector.load %arg3[%c0_3, %c0_4] : memref<1x128xf32, #tpu.memory_space<vmem>>, vector<1x128xf32>
    %cst = arith.constant dense<0.000000e+00> : vector<128x128xf32>
    %3 = tpu.matmul %0, %1, %cst {dimension_numbers = #tpu.dot_dimension_numbers<[1], [0], [0], [1], [0, 0, 1, 1], [], []>} : vector<128x128xf32>, vector<128x128xf32>, vector<128x128xf32> -> vector<128x128xf32>
    %4 = vector.broadcast %2 : vector<1x128xf32> to vector<128x128xf32>
    %5 = arith.addf %3, %4 : vector<128x128xf32>
    %cst_5 = arith.constant 0.000000e+00 : f32
    %6 = vector.broadcast %cst_5 : f32 to vector<128x128xf32>
    %7 = arith.cmpf ogt, %5, %6 : vector<128x128xf32>
    %cst_6 = arith.constant 2.000000e-01 : f32
    %8 = vector.broadcast %cst_6 : f32 to vector<128x128xf32>
    %9 = arith.mulf %8, %5 : vector<128x128xf32>
    %10 = arith.select %7, %5, %9 : vector<128x128xi1>, vector<128x128xf32>
    %c0_7 = arith.constant 0 : index
    %c0_8 = arith.constant 0 : index
    %11 = vector.load %arg4[%c0_7, %c0_8] : memref<128x128xf32, #tpu.memory_space<vmem>>, vector<128x128xf32>
    %c0_9 = arith.constant 0 : index
    %c0_10 = arith.constant 0 : index
    %12 = vector.load %arg5[%c0_9, %c0_10] : memref<1x128xf32, #tpu.memory_space<vmem>>, vector<1x128xf32>
    %cst_11 = arith.constant dense<0.000000e+00> : vector<128x128xf32>
    %13 = tpu.matmul %10, %11, %cst_11 {dimension_numbers = #tpu.dot_dimension_numbers<[1], [0], [0], [1], [0, 0, 1, 1], [], []>} : vector<128x128xf32>, vector<128x128xf32>, vector<128x128xf32> -> vector<128x128xf32>
    %14 = vector.broadcast %12 : vector<1x128xf32> to vector<128x128xf32>
    %15 = arith.addf %13, %14 : vector<128x128xf32>
    %cst_12 = arith.constant 0.000000e+00 : f32
    %16 = vector.broadcast %cst_12 : f32 to vector<128x128xf32>
    %17 = arith.cmpf ogt, %15, %16 : vector<128x128xf32>
    %cst_13 = arith.constant 2.000000e-01 : f32
    %18 = vector.broadcast %cst_13 : f32 to vector<128x128xf32>
    %19 = arith.mulf %18, %15 : vector<128x128xf32>
    %20 = arith.select %17, %15, %19 : vector<128x128xi1>, vector<128x128xf32>
    %c0_14 = arith.constant 0 : index
    %c0_15 = arith.constant 0 : index
    %21 = vector.load %arg6[%c0_14, %c0_15] : memref<128x128xf32, #tpu.memory_space<vmem>>, vector<128x128xf32>
    %c0_16 = arith.constant 0 : index
    %c0_17 = arith.constant 0 : index
    %22 = vector.load %arg7[%c0_16, %c0_17] : memref<1x128xf32, #tpu.memory_space<vmem>>, vector<1x128xf32>
    %cst_18 = arith.constant dense<0.000000e+00> : vector<128x128xf32>
    %23 = tpu.matmul %20, %21, %cst_18 {dimension_numbers = #tpu.dot_dimension_numbers<[1], [0], [0], [1], [0, 0, 1, 1], [], []>} : vector<128x128xf32>, vector<128x128xf32>, vector<128x128xf32> -> vector<128x128xf32>
    %24 = vector.broadcast %22 : vector<1x128xf32> to vector<128x128xf32>
    %25 = arith.addf %23, %24 : vector<128x128xf32>
    %cst_19 = arith.constant 0.000000e+00 : f32
    %26 = vector.broadcast %cst_19 : f32 to vector<128x128xf32>
    %27 = arith.cmpf ogt, %25, %26 : vector<128x128xf32>
    %cst_20 = arith.constant 2.000000e-01 : f32
    %28 = vector.broadcast %cst_20 : f32 to vector<128x128xf32>
    %29 = arith.mulf %28, %25 : vector<128x128xf32>
    %30 = arith.select %27, %25, %29 : vector<128x128xi1>, vector<128x128xf32>
    %c0_21 = arith.constant 0 : index
    %c0_22 = arith.constant 0 : index
    %31 = vector.load %arg8[%c0_21, %c0_22] : memref<128x128xf32, #tpu.memory_space<vmem>>, vector<128x128xf32>
    %c0_23 = arith.constant 0 : index
    %c0_24 = arith.constant 0 : index
    %32 = vector.load %arg9[%c0_23, %c0_24] : memref<1x128xf32, #tpu.memory_space<vmem>>, vector<1x128xf32>
    %cst_25 = arith.constant dense<0.000000e+00> : vector<128x128xf32>
    %33 = tpu.matmul %30, %31, %cst_25 {dimension_numbers = #tpu.dot_dimension_numbers<[1], [0], [0], [1], [0, 0, 1, 1], [], []>} : vector<128x128xf32>, vector<128x128xf32>, vector<128x128xf32> -> vector<128x128xf32>
    %34 = vector.broadcast %32 : vector<1x128xf32> to vector<128x128xf32>
    %35 = arith.addf %33, %34 : vector<128x128xf32>
    %36 = tpu.transpose %35, [1, 0] : vector<128x128xf32> -> vector<128x128xf32>
    %37 = vector.extract_strided_slice %36 {offsets = [0, 0], sizes = [1, 128], strides = [1, 1]} : vector<128x128xf32> to vector<1x128xf32>
    %cst_26 = arith.constant 0.000000e+00 : f32
    %38 = vector.broadcast %cst_26 : f32 to vector<1x128xf32>
    %39 = arith.subf %38, %37 : vector<1x128xf32>
    %40 = math.exp %39 : vector<1x128xf32>
    %cst_27 = arith.constant 1.000000e+00 : f32
    %41 = vector.broadcast %cst_27 : f32 to vector<1x128xf32>
    %42 = arith.addf %41, %40 : vector<1x128xf32>
    %43 = tpu.reciprocal %42 : vector<1x128xf32> -> vector<1x128xf32>
    %c0_28 = arith.constant 0 : index
    %c0_29 = arith.constant 0 : index
    %44 = vector.load %arg10[%c0_28, %c0_29] : memref<1x128xf32, #tpu.memory_space<vmem>>, vector<1x128xf32>
    tpu.vector_store %arg10[%c0_28, %c0_29], %43 {strides = array<i32>} : memref<1x128xf32, #tpu.memory_space<vmem>>, vector<1x128xf32>,
    return
  }
  func.func @transform_0(%arg0: i32) -> (i32, i32) {
    %c0_i32 = arith.constant 0 : i32
    %c0_i32_0 = arith.constant 0 : i32
    return %arg0, %c0_i32 : i32, i32
  }
  func.func @transform_1(%arg0: i32) -> (i32, i32) {
    %c0_i32 = arith.constant 0 : i32
    %c0_i32_0 = arith.constant 0 : i32
    %c0_i32_1 = arith.constant 0 : i32
    return %c0_i32, %c0_i32_0 : i32, i32
  }
  func.func @transform_2(%arg0: i32) -> (i32, i32) {
    %c0_i32 = arith.constant 0 : i32
    %c0_i32_0 = arith.constant 0 : i32
    %c0_i32_1 = arith.constant 0 : i32
    return %c0_i32, %c0_i32_0 : i32, i32
  }
  func.func @transform_3(%arg0: i32) -> (i32, i32) {
    %c0_i32 = arith.constant 0 : i32
    %c0_i32_0 = arith.constant 0 : i32
    %c0_i32_1 = arith.constant 0 : i32
    return %c0_i32, %c0_i32_0 : i32, i32
  }
  func.func @transform_4(%arg0: i32) -> (i32, i32) {
    %c0_i32 = arith.constant 0 : i32
    %c0_i32_0 = arith.constant 0 : i32
    %c0_i32_1 = arith.constant 0 : i32
    return %c0_i32, %c0_i32_0 : i32, i32
  }
  func.func @transform_5(%arg0: i32) -> (i32, i32) {
    %c0_i32 = arith.constant 0 : i32
    %c0_i32_0 = arith.constant 0 : i32
    %c0_i32_1 = arith.constant 0 : i32
    return %c0_i32, %c0_i32_0 : i32, i32
  }
  func.func @transform_6(%arg0: i32) -> (i32, i32) {
    %c0_i32 = arith.constant 0 : i32
    %c0_i32_0 = arith.constant 0 : i32
    %c0_i32_1 = arith.constant 0 : i32
    return %c0_i32, %c0_i32_0 : i32, i32
  }
  func.func @transform_7(%arg0: i32) -> (i32, i32) {
    %c0_i32 = arith.constant 0 : i32
    %c0_i32_0 = arith.constant 0 : i32
    %c0_i32_1 = arith.constant 0 : i32
    return %c0_i32, %c0_i32_0 : i32, i32
  }
  func.func @transform_8(%arg0: i32) -> (i32, i32) {
    %c0_i32 = arith.constant 0 : i32
    %c0_i32_0 = arith.constant 0 : i32
    %c0_i32_1 = arith.constant 0 : i32
    return %c0_i32, %c0_i32_0 : i32, i32
  }
  func.func @transform_9(%arg0: i32) -> (i32, i32) {
    %c0_i32 = arith.constant 0 : i32
    %c0_i32_0 = arith.constant 0 : i32
    return %c0_i32, %arg0 : i32, i32
  }
}

module attributes {stable_mosaic.version = 11 : i64} {
  func.func @kernel(%arg0: i32, %arg1: memref<128x128xf32, #tpu.memory_space<vmem>>, %arg2: memref<128x128xf32, #tpu.memory_space<vmem>>, %arg3: memref<1x128xf32, #tpu.memory_space<vmem>>, %arg4: memref<128x128xf32, #tpu.memory_space<vmem>>, %arg5: memref<1x128xf32, #tpu.memory_space<vmem>>, %arg6: memref<128x128xf32, #tpu.memory_space<vmem>>, %arg7: memref<1x128xf32, #tpu.memory_space<vmem>>, %arg8: memref<128x128xf32, #tpu.memory_space<vmem>>, %arg9: memref<1x128xf32, #tpu.memory_space<vmem>>, %arg10: memref<1x128xf32, #tpu.memory_space<vmem>>) attributes {dimension_semantics = [#tpu.dimension_semantics<parallel>], iteration_bounds = array<i64: 1>, scalar_prefetch = 0 : i64, scratch_operands = 0 : i64, tpu.core_type = #tpu.core_type<tc>, window_params = [{transform_indices = @transform_0, window_bounds = array<i64: 128, 128>}, {pipeline_mode = #tpu.pipeline_mode<synchronous>, transform_indices = @transform_1, window_bounds = array<i64: 128, 128>}, {pipeline_mode = #tpu.pipeline_mode<synchronous>, transform_indices = @transform_2, window_bounds = array<i64: 1, 128>}, {pipeline_mode = #tpu.pipeline_mode<synchronous>, transform_indices = @transform_3, window_bounds = array<i64: 128, 128>}, {pipeline_mode = #tpu.pipeline_mode<synchronous>, transform_indices = @transform_4, window_bounds = array<i64: 1, 128>}, {pipeline_mode = #tpu.pipeline_mode<synchronous>, transform_indices = @transform_5, window_bounds = array<i64: 128, 128>}, {pipeline_mode = #tpu.pipeline_mode<synchronous>, transform_indices = @transform_6, window_bounds = array<i64: 1, 128>}, {pipeline_mode = #tpu.pipeline_mode<synchronous>, transform_indices = @transform_7, window_bounds = array<i64: 128, 128>}, {pipeline_mode = #tpu.pipeline_mode<synchronous>, transform_indices = @transform_8, window_bounds = array<i64: 1, 128>}, {transform_indices = @transform_9, window_bounds = array<i64: 1, 128>}]} {
    %c0 = arith.constant 0 : index
    %c0_0 = arith.constant 0 : index
    %0 = vector.load %arg1[%c0, %c0_0] : memref<128x128xf32, #tpu.memory_space<vmem>>, vector<128x128xf32>
    %c0_1 = arith.constant 0 : index
    %c0_2 = arith.constant 0 : index
    %1 = vector.load %arg2[%c0_1, %c0_2] : memref<128x128xf32, #tpu.memory_space<vmem>>, vector<128x128xf32>
    %c0_3 = arith.constant 0 : index
    %c0_4 = arith.constant 0 : index
    %2 = vector.load %arg3[%c0_3, %c0_4] : memref<1x128xf32, #tpu.memory_space<vmem>>, vector<1x128xf32>
    %cst = arith.constant dense<0.000000e+00> : vector<128x128xf32>
    %3 = tpu.matmul %0, %1, %cst {dimension_numbers = #tpu.dot_dimension_numbers<[1], [0], [0], [1], [0, 0, 1, 1], [], []>} : vector<128x128xf32>, vector<128x128xf32>, vector<128x128xf32> -> vector<128x128xf32>
    %4 = vector.broadcast %2 : vector<1x128xf32> to vector<128x128xf32>
    %5 = arith.addf %3, %4 : vector<128x128xf32>
    %cst_5 = arith.constant 0.000000e+00 : f32
    %6 = vector.broadcast %cst_5 : f32 to vector<128x128xf32>
    %7 = arith.cmpf ogt, %5, %6 : vector<128x128xf32>
    %cst_6 = arith.constant 2.000000e-01 : f32
    %8 = vector.broadcast %cst_6 : f32 to vector<128x128xf32>
    %9 = arith.mulf %8, %5 : vector<128x128xf32>
    %10 = arith.select %7, %5, %9 : vector<128x128xi1>, vector<128x128xf32>
    %c0_7 = arith.constant 0 : index
    %c0_8 = arith.constant 0 : index
    %11 = vector.load %arg4[%c0_7, %c0_8] : memref<128x128xf32, #tpu.memory_space<vmem>>, vector<128x128xf32>
    %c0_9 = arith.constant 0 : index
    %c0_10 = arith.constant 0 : index
    %12 = vector.load %arg5[%c0_9, %c0_10] : memref<1x128xf32, #tpu.memory_space<vmem>>, vector<1x128xf32>
    %cst_11 = arith.constant dense<0.000000e+00> : vector<128x128xf32>
    %13 = tpu.matmul %10, %11, %cst_11 {dimension_numbers = #tpu.dot_dimension_numbers<[1], [0], [0], [1], [0, 0, 1, 1], [], []>} : vector<128x128xf32>, vector<128x128xf32>, vector<128x128xf32> -> vector<128x128xf32>
    %14 = vector.broadcast %12 : vector<1x128xf32> to vector<128x128xf32>
    %15 = arith.addf %13, %14 : vector<128x128xf32>
    %cst_12 = arith.constant 0.000000e+00 : f32
    %16 = vector.broadcast %cst_12 : f32 to vector<128x128xf32>
    %17 = arith.cmpf ogt, %15, %16 : vector<128x128xf32>
    %cst_13 = arith.constant 2.000000e-01 : f32
    %18 = vector.broadcast %cst_13 : f32 to vector<128x128xf32>
    %19 = arith.mulf %18, %15 : vector<128x128xf32>
    %20 = arith.select %17, %15, %19 : vector<128x128xi1>, vector<128x128xf32>
    %c0_14 = arith.constant 0 : index
    %c0_15 = arith.constant 0 : index
    %21 = vector.load %arg6[%c0_14, %c0_15] : memref<128x128xf32, #tpu.memory_space<vmem>>, vector<128x128xf32>
    %c0_16 = arith.constant 0 : index
    %c0_17 = arith.constant 0 : index
    %22 = vector.load %arg7[%c0_16, %c0_17] : memref<1x128xf32, #tpu.memory_space<vmem>>, vector<1x128xf32>
    %cst_18 = arith.constant dense<0.000000e+00> : vector<128x128xf32>
    %23 = tpu.matmul %20, %21, %cst_18 {dimension_numbers = #tpu.dot_dimension_numbers<[1], [0], [0], [1], [0, 0, 1, 1], [], []>} : vector<128x128xf32>, vector<128x128xf32>, vector<128x128xf32> -> vector<128x128xf32>
    %24 = vector.broadcast %22 : vector<1x128xf32> to vector<128x128xf32>
    %25 = arith.addf %23, %24 : vector<128x128xf32>
    %cst_19 = arith.constant 0.000000e+00 : f32
    %26 = vector.broadcast %cst_19 : f32 to vector<128x128xf32>
    %27 = arith.cmpf ogt, %25, %26 : vector<128x128xf32>
    %cst_20 = arith.constant 2.000000e-01 : f32
    %28 = vector.broadcast %cst_20 : f32 to vector<128x128xf32>
    %29 = arith.mulf %28, %25 : vector<128x128xf32>
    %30 = arith.select %27, %25, %29 : vector<128x128xi1>, vector<128x128xf32>
    %c0_21 = arith.constant 0 : index
    %c0_22 = arith.constant 0 : index
    %31 = vector.load %arg8[%c0_21, %c0_22] : memref<128x128xf32, #tpu.memory_space<vmem>>, vector<128x128xf32>
    %c0_23 = arith.constant 0 : index
    %c0_24 = arith.constant 0 : index
    %32 = vector.load %arg9[%c0_23, %c0_24] : memref<1x128xf32, #tpu.memory_space<vmem>>, vector<1x128xf32>
    %cst_25 = arith.constant dense<0.000000e+00> : vector<128x128xf32>
    %33 = tpu.matmul %30, %31, %cst_25 {dimension_numbers = #tpu.dot_dimension_numbers<[1], [0], [0], [1], [0, 0, 1, 1], [], []>} : vector<128x128xf32>, vector<128x128xf32>, vector<128x128xf32> -> vector<128x128xf32>
    %34 = vector.broadcast %32 : vector<1x128xf32> to vector<128x128xf32>
    %35 = arith.addf %33, %34 : vector<128x128xf32>
    %36 = tpu.transpose %35, [1, 0] : vector<128x128xf32> -> vector<128x128xf32>
    %37 = vector.extract_strided_slice %36 {offsets = [0, 0], sizes = [1, 128], strides = [1, 1]} : vector<128x128xf32> to vector<1x128xf32>
    %cst_26 = arith.constant 0.000000e+00 : f32
    %38 = vector.broadcast %cst_26 : f32 to vector<1x128xf32>
    %39 = arith.subf %38, %37 : vector<1x128xf32>
    %40 = math.exp %39 : vector<1x128xf32>
    %cst_27 = arith.constant 1.000000e+00 : f32
    %41 = vector.broadcast %cst_27 : f32 to vector<1x128xf32>
    %42 = arith.addf %41, %40 : vector<1x128xf32>
    %43 = tpu.reciprocal %42 : vector<1x128xf32> -> vector<1x128xf32>
    %c0_28 = arith.constant 0 : index
    %c0_29 = arith.constant 0 : index
    %44 = vector.load %arg10[%c0_28, %c0_29] : memref<1x128xf32, #tpu.memory_space<vmem>>, vector<1x128xf32>
    tpu.vector_store %arg10[%c0_28, %c0_29], %43 {strides = array<i32>} : memref<1x128xf32, #tpu.memory_space<vmem>>, vector<1x128xf32>,
    return
  }
  func.func @transform_0(%arg0: i32) -> (i32, i32) {
    %c0_i32 = arith.constant 0 : i32
    %c0_i32_0 = arith.constant 0 : i32
    return %arg0, %c0_i32 : i32, i32
  }
  func.func @transform_1(%arg0: i32) -> (i32, i32) {
    %c0_i32 = arith.constant 0 : i32
    %c0_i32_0 = arith.constant 0 : i32
    %c0_i32_1 = arith.constant 0 : i32
    return %c0_i32, %c0_i32_0 : i32, i32
  }
  func.func @transform_2(%arg0: i32) -> (i32, i32) {
    %c0_i32 = arith.constant 0 : i32
    %c0_i32_0 = arith.constant 0 : i32
    %c0_i32_1 = arith.constant 0 : i32
    return %c0_i32, %c0_i32_0 : i32, i32
  }
  func.func @transform_3(%arg0: i32) -> (i32, i32) {
    %c0_i32 = arith.constant 0 : i32
    %c0_i32_0 = arith.constant 0 : i32
    %c0_i32_1 = arith.constant 0 : i32
    return %c0_i32, %c0_i32_0 : i32, i32
  }
  func.func @transform_4(%arg0: i32) -> (i32, i32) {
    %c0_i32 = arith.constant 0 : i32
    %c0_i32_0 = arith.constant 0 : i32
    %c0_i32_1 = arith.constant 0 : i32
    return %c0_i32, %c0_i32_0 : i32, i32
  }
  func.func @transform_5(%arg0: i32) -> (i32, i32) {
    %c0_i32 = arith.constant 0 : i32
    %c0_i32_0 = arith.constant 0 : i32
    %c0_i32_1 = arith.constant 0 : i32
    return %c0_i32, %c0_i32_0 : i32, i32
  }
  func.func @transform_6(%arg0: i32) -> (i32, i32) {
    %c0_i32 = arith.constant 0 : i32
    %c0_i32_0 = arith.constant 0 : i32
    %c0_i32_1 = arith.constant 0 : i32
    return %c0_i32, %c0_i32_0 : i32, i32
  }
  func.func @transform_7(%arg0: i32) -> (i32, i32) {
    %c0_i32 = arith.constant 0 : i32
    %c0_i32_0 = arith.constant 0 : i32
    %c0_i32_1 = arith.constant 0 : i32
    return %c0_i32, %c0_i32_0 : i32, i32
  }
  func.func @transform_8(%arg0: i32) -> (i32, i32) {
    %c0_i32 = arith.constant 0 : i32
    %c0_i32_0 = arith.constant 0 : i32
    %c0_i32_1 = arith.constant 0 : i32
    return %c0_i32, %c0_i32_0 : i32, i32
  }
  func.func @transform_9(%arg0: i32) -> (i32, i32) {
    %c0_i32 = arith.constant 0 : i32
    %c0_i32_0 = arith.constant 0 : i32
    return %c0_i32, %arg0 : i32, i32
  }
}

</mosaic_0001>

<llo_original>
// kernel: discriminator_forward.1
$region0: #{discriminator_forward.1}
  #allocation0 [shape = 'u32[]', space=smem, size = 0x4, offset = 0x4, fixed_abs, tag = 'smem constant byte address 0x4 - core index']
  #allocation1 [shape = 'u32[144,128]{1,0:T(1,128)}', space=vmem, size = 0x12000, scoped, tag = 'internal scratch']
  %s0 = inlined_call_operand.vmem [shape: f32[128,128], index: 0, kind: input, shape index: {}]
  %s1 = inlined_call_operand.vmem [shape: f32[128,128], index: 1, kind: input, shape index: {}]
  %s2 = inlined_call_operand.vmem [shape: f32[1,128], index: 2, kind: input, shape index: {}]
  %s3 = inlined_call_operand.vmem [shape: f32[128,128], index: 3, kind: input, shape index: {}]
  %s4 = inlined_call_operand.vmem [shape: f32[1,128], index: 4, kind: input, shape index: {}]
  %s5 = inlined_call_operand.vmem [shape: f32[128,128], index: 5, kind: input, shape index: {}]
  %s6 = inlined_call_operand.vmem [shape: f32[1,128], index: 6, kind: input, shape index: {}]
  %s7 = inlined_call_operand.vmem [shape: f32[128,128], index: 7, kind: input, shape index: {}]
  %s8 = inlined_call_operand.vmem [shape: f32[1,128], index: 8, kind: input, shape index: {}]
  %s9 = inlined_call_operand.vmem [shape: f32[1,128], index: 9, kind: output, shape index: {}]
  %s10 = sld [smem:[#allocation0]]
  $region46: #{discriminator_forward.1} parent=0
    _
  %s12 = ssub.s32 1, %s10
  %s13 = scalar_select 0, %s12, %s10
  // Predicated region
  $region2: #{discriminator_forward.1} parent=0 // pred_check
    _
  $region3: #{discriminator_forward.1} parent=0 // pred_check_branch
    %15 = sbr.rel (0) target = $region5
  $region4: #{discriminator_forward.1} parent=0 // pred_region
    _
  $region5: #{discriminator_forward.1} parent=0 // pred_fallthru
    _
  // Predicated region
  $region6: #{discriminator_forward.1} parent=0 // pred_check
    _
  $region7: #{discriminator_forward.1} parent=0 // pred_check_branch
    %17 = sbr.rel (0) target = $region9
  $region8: #{discriminator_forward.1} parent=0 // pred_region
    _
  $region9: #{discriminator_forward.1} parent=0 // pred_fallthru
    _
  // Predicated region
  $region10: #{discriminator_forward.1} parent=0 // pred_check
    _
  $region11: #{discriminator_forward.1} parent=0 // pred_check_branch
    %19 = sbr.rel (0) target = $region13
  $region12: #{discriminator_forward.1} parent=0 // pred_region
    _
  $region13: #{discriminator_forward.1} parent=0 // pred_fallthru
    _
  // Predicated region
  $region14: #{discriminator_forward.1} parent=0 // pred_check
    _
  $region15: #{discriminator_forward.1} parent=0 // pred_check_branch
    %21 = sbr.rel (0) target = $region17
  $region16: #{discriminator_forward.1} parent=0 // pred_region
    _
  $region17: #{discriminator_forward.1} parent=0 // pred_fallthru
    _
  // Predicated region
  $region18: #{discriminator_forward.1} parent=0 // pred_check
    _
  $region19: #{discriminator_forward.1} parent=0 // pred_check_branch
    %23 = sbr.rel (0) target = $region21
  $region20: #{discriminator_forward.1} parent=0 // pred_region
    _
  $region21: #{discriminator_forward.1} parent=0 // pred_fallthru
    _
  // Predicated region
  $region22: #{discriminator_forward.1} parent=0 // pred_check
    _
  $region23: #{discriminator_forward.1} parent=0 // pred_check_branch
    %25 = sbr.rel (0) target = $region25
  $region24: #{discriminator_forward.1} parent=0 // pred_region
    _
  $region25: #{discriminator_forward.1} parent=0 // pred_fallthru
    _
  // Predicated region
  $region26: #{discriminator_forward.1} parent=0 // pred_check
    _
  $region27: #{discriminator_forward.1} parent=0 // pred_check_branch
    %27 = sbr.rel (0) target = $region29
  $region28: #{discriminator_forward.1} parent=0 // pred_region
    _
  $region29: #{discriminator_forward.1} parent=0 // pred_fallthru
    _
  // Predicated region
  $region30: #{discriminator_forward.1} parent=0 // pred_check
    _
  $region31: #{discriminator_forward.1} parent=0 // pred_check_branch
    %29 = sbr.rel (0) target = $region33
  $region32: #{discriminator_forward.1} parent=0 // pred_region
    _
  $region33: #{discriminator_forward.1} parent=0 // pred_fallthru
    _
  // Predicated region
  $region34: #{discriminator_forward.1} parent=0 // pred_check
    _
  $region35: #{discriminator_forward.1} parent=0 // pred_check_branch
    %31 = sbr.rel (0) target = $region37
  $region36: #{discriminator_forward.1} parent=0 // pred_region
    _
  $region37: #{discriminator_forward.1} parent=0 // pred_fallthru
    _
  %v32 = vld [vmem:[%s0] sm:$0xff]
  %v33 = vld [vmem:[%s0 + $0x8] sm:$0xff]
  %v34 = vld [vmem:[%s0 + $0x10] sm:$0xff]
  %v35 = vld [vmem:[%s0 + $0x18] sm:$0xff]
  %v36 = vld [vmem:[%s0 + $0x20] sm:$0xff]
  %v37 = vld [vmem:[%s0 + $0x28] sm:$0xff]
  %v38 = vld [vmem:[%s0 + $0x30] sm:$0xff]
  %v39 = vld [vmem:[%s0 + $0x38] sm:$0xff]
  %v40 = vld [vmem:[%s0 + $0x40] sm:$0xff]
  %v41 = vld [vmem:[%s0 + $0x48] sm:$0xff]
  %v42 = vld [vmem:[%s0 + $0x50] sm:$0xff]
  %v43 = vld [vmem:[%s0 + $0x58] sm:$0xff]
  %v44 = vld [vmem:[%s0 + $0x60] sm:$0xff]
  %v45 = vld [vmem:[%s0 + $0x68] sm:$0xff]
  %v46 = vld [vmem:[%s0 + $0x70] sm:$0xff]
  %v47 = vld [vmem:[%s0 + $0x78] sm:$0xff]
  %v48 = vld [vmem:[%s1] sm:$0xff]
  %v49 = vld [vmem:[%s1 + $0x8] sm:$0xff]
  %v50 = vld [vmem:[%s1 + $0x10] sm:$0xff]
  %v51 = vld [vmem:[%s1 + $0x18] sm:$0xff]
  %v52 = vld [vmem:[%s1 + $0x20] sm:$0xff]
  %v53 = vld [vmem:[%s1 + $0x28] sm:$0xff]
  %v54 = vld [vmem:[%s1 + $0x30] sm:$0xff]
  %v55 = vld [vmem:[%s1 + $0x38] sm:$0xff]
  %v56 = vld [vmem:[%s1 + $0x40] sm:$0xff]
  %v57 = vld [vmem:[%s1 + $0x48] sm:$0xff]
  %v58 = vld [vmem:[%s1 + $0x50] sm:$0xff]
  %v59 = vld [vmem:[%s1 + $0x58] sm:$0xff]
  %v60 = vld [vmem:[%s1 + $0x60] sm:$0xff]
  %v61 = vld [vmem:[%s1 + $0x68] sm:$0xff]
  %v62 = vld [vmem:[%s1 + $0x70] sm:$0xff]
  %v63 = vld [vmem:[%s1 + $0x78] sm:$0xff]
  %v64 = vld [vmem:[%s2] sm:$0x1]
  %v66 = vlaneseq
  %v67 = vshrl.u32 %v66, 7
  %v68 = vsub.s32 0, %v67
  %v69 = vrot.slane %v64, %v68
  %71 = vmatprep.subr.mxu0 0.0
  %72 = vmatpush1.msra.mxu0 %v48
  %73 = vmatprep.subr.mxu0 0.0
  %74 = vmatpush1.msra.mxu0 %v49
  %75 = vmatprep.subr.mxu0 0.0
  %76 = vmatpush1.msra.mxu0 %v50
  %77 = vmatprep.subr.mxu0 0.0
  %78 = vmatpush1.msra.mxu0 %v51
  %79 = vmatprep.subr.mxu0 0.0
  %80 = vmatpush1.msra.mxu0 %v52
  %81 = vmatprep.subr.mxu0 0.0
  %82 = vmatpush1.msra.mxu0 %v53
  %83 = vmatprep.subr.mxu0 0.0
  %84 = vmatpush1.msra.mxu0 %v54
  %85 = vmatprep.subr.mxu0 0.0
  %86 = vmatpush1.msra.mxu0 %v55
  %87 = vmatprep.subr.mxu0 0.0
  %88 = vmatpush1.msra.mxu0 %v56
  %89 = vmatprep.subr.mxu0 0.0
  %90 = vmatpush1.msra.mxu0 %v57
  %91 = vmatprep.subr.mxu0 0.0
  %92 = vmatpush1.msra.mxu0 %v58
  %93 = vmatprep.subr.mxu0 0.0
  %94 = vmatpush1.msra.mxu0 %v59
  %95 = vmatprep.subr.mxu0 0.0
  %96 = vmatpush1.msra.mxu0 %v60
  %97 = vmatprep.subr.mxu0 0.0
  %98 = vmatpush1.msra.mxu0 %v61
  %99 = vmatprep.subr.mxu0 0.0
  %100 = vmatpush1.msra.mxu0 %v62
  %101 = vmatprep.subr.mxu0 0.0
  %102 = vmatpush1.msra.mxu0 %v63
  %103 = vmatprep.subr.mxu0 0.0
  %104 = vmatpush1.msra.mxu0 0.0
  %105 = vmatprep.subr.mxu0 0.0
  %106 = vmatpush1.msra.mxu0 0.0
  %107 = vmatprep.subr.mxu0 0.0
  %108 = vmatpush1.msra.mxu0 0.0
  %109 = vmatprep.subr.mxu0 0.0
  %110 = vmatpush1.msra.mxu0 0.0
  %111 = vmatprep.subr.mxu0 0.0
  %112 = vmatpush1.msra.mxu0 0.0
  %113 = vmatprep.subr.mxu0 0.0
  %114 = vmatpush1.msra.mxu0 0.0
  %115 = vmatprep.subr.mxu0 0.0
  %116 = vmatpush1.msra.mxu0 0.0
  %117 = vmatprep.subr.mxu0 0.0
  %118 = vmatpush1.msra.mxu0 0.0
  %119 = vmatprep.subr.mxu0 0.0
  %120 = vmatpush1.msra.mxu0 0.0
  %121 = vmatprep.subr.mxu0 0.0
  %122 = vmatpush1.msra.mxu0 0.0
  %123 = vmatprep.subr.mxu0 0.0
  %124 = vmatpush1.msra.mxu0 0.0
  %125 = vmatprep.subr.mxu0 0.0
  %126 = vmatpush1.msra.mxu0 0.0
  %127 = vmatprep.subr.mxu0 0.0
  %128 = vmatpush1.msra.mxu0 0.0
  %129 = vmatprep.subr.mxu0 0.0
  %130 = vmatpush1.msra.mxu0 0.0
  %131 = vmatprep.subr.mxu0 0.0
  %132 = vmatpush1.msra.mxu0 0.0
  %133 = vmatprep.subr.mxu0 0.0
  %134 = vmatpush1.msra.mxu0 0.0
  %135 = vmatprep.mubr.f32.mxu0 0.0
  %136 = vmatmul.mubr.f32.gmra.mrb[0].mxu0 %v32
  %v137 = vpop.f32.mrb[0].mxu0
  %v138 = vadd.f32 %v69, %v137
  %v139 = vpop.f32.mrb[0].mxu0
  %140 = vmatprep.mubr.f32.mxu0 0.0
  %141 = vmatmul.mubr.f32.gmra.mrb[0].mxu0 %v33
  %v142 = vpop.f32.mrb[0].mxu0
  %v143 = vadd.f32 %v69, %v142
  %v144 = vpop.f32.mrb[0].mxu0
  %145 = vmatprep.mubr.f32.mxu0 0.0
  %146 = vmatmul.mubr.f32.gmra.mrb[0].mxu0 %v34
  %v147 = vpop.f32.mrb[0].mxu0
  %v148 = vadd.f32 %v69, %v147
  %v149 = vpop.f32.mrb[0].mxu0
  %150 = vmatprep.mubr.f32.mxu0 0.0
  %151 = vmatmul.mubr.f32.gmra.mrb[0].mxu0 %v35
  %v152 = vpop.f32.mrb[0].mxu0
  %v153 = vadd.f32 %v69, %v152
  %v154 = vpop.f32.mrb[0].mxu0
  %155 = vmatprep.mubr.f32.mxu0 0.0
  %156 = vmatmul.mubr.f32.gmra.mrb[0].mxu0 %v36
  %v157 = vpop.f32.mrb[0].mxu0
  %v158 = vadd.f32 %v69, %v157
  %v159 = vpop.f32.mrb[0].mxu0
  %160 = vmatprep.mubr.f32.mxu0 0.0
  %161 = vmatmul.mubr.f32.gmra.mrb[0].mxu0 %v37
  %v162 = vpop.f32.mrb[0].mxu0
  %v163 = vadd.f32 %v69, %v162
  %v164 = vpop.f32.mrb[0].mxu0
  %165 = vmatprep.mubr.f32.mxu0 0.0
  %166 = vmatmul.mubr.f32.gmra.mrb[0].mxu0 %v38
  %v167 = vpop.f32.mrb[0].mxu0
  %v168 = vadd.f32 %v69, %v167
  %v169 = vpop.f32.mrb[0].mxu0
  %170 = vmatprep.mubr.f32.mxu0 0.0
  %171 = vmatmul.mubr.f32.gmra.mrb[0].mxu0 %v39
  %v172 = vpop.f32.mrb[0].mxu0
  %v173 = vadd.f32 %v69, %v172
  %v174 = vpop.f32.mrb[0].mxu0
  %175 = vmatprep.mubr.f32.mxu0 0.0
  %176 = vmatmul.mubr.f32.gmra.mrb[0].mxu0 %v40
  %v177 = vpop.f32.mrb[0].mxu0
  %v178 = vadd.f32 %v69, %v177
  %v179 = vpop.f32.mrb[0].mxu0
  %180 = vmatprep.mubr.f32.mxu0 0.0
  %181 = vmatmul.mubr.f32.gmra.mrb[0].mxu0 %v41
  %v182 = vpop.f32.mrb[0].mxu0
  %v183 = vadd.f32 %v69, %v182
  %v184 = vpop.f32.mrb[0].mxu0
  %185 = vmatprep.mubr.f32.mxu0 0.0
  %186 = vmatmul.mubr.f32.gmra.mrb[0].mxu0 %v42
  %v187 = vpop.f32.mrb[0].mxu0
  %v188 = vadd.f32 %v69, %v187
  %v189 = vpop.f32.mrb[0].mxu0
  %190 = vmatprep.mubr.f32.mxu0 0.0
  %191 = vmatmul.mubr.f32.gmra.mrb[0].mxu0 %v43
  %v192 = vpop.f32.mrb[0].mxu0
  %v193 = vadd.f32 %v69, %v192
  %v194 = vpop.f32.mrb[0].mxu0
  %195 = vmatprep.mubr.f32.mxu0 0.0
  %196 = vmatmul.mubr.f32.gmra.mrb[0].mxu0 %v44
  %v197 = vpop.f32.mrb[0].mxu0
  %v198 = vadd.f32 %v69, %v197
  %v199 = vpop.f32.mrb[0].mxu0
  %200 = vmatprep.mubr.f32.mxu0 0.0
  %201 = vmatmul.mubr.f32.gmra.mrb[0].mxu0 %v45
  %v202 = vpop.f32.mrb[0].mxu0
  %v203 = vadd.f32 %v69, %v202
  %v204 = vpop.f32.mrb[0].mxu0
  %205 = vmatprep.mubr.f32.mxu0 0.0
  %206 = vmatmul.mubr.f32.gmra.mrb[0].mxu0 %v46
  %v207 = vpop.f32.mrb[0].mxu0
  %v208 = vadd.f32 %v69, %v207
  %v209 = vpop.f32.mrb[0].mxu0
  %210 = vmatprep.mubr.f32.mxu0 0.0
  %211 = vmatmul.mubr.f32.gmra.mrb[0].mxu0 %v47
  %v212 = vpop.f32.mrb[0].mxu0
  %v213 = vadd.f32 %v69, %v212
  %v214 = vpop.f32.mrb[0].mxu0
  %215 = vdwg.mxu0
  %vm216 = vcmp.gt.f32.partialorder %v138, 0.0
  %vm217 = vcmp.gt.f32.partialorder %v143, 0.0
  %vm218 = vcmp.gt.f32.partialorder %v148, 0.0
  %vm219 = vcmp.gt.f32.partialorder %v153, 0.0
  %vm220 = vcmp.gt.f32.partialorder %v158, 0.0
  %vm221 = vcmp.gt.f32.partialorder %v163, 0.0
  %vm222 = vcmp.gt.f32.partialorder %v168, 0.0
  %vm223 = vcmp.gt.f32.partialorder %v173, 0.0
  %vm224 = vcmp.gt.f32.partialorder %v178, 0.0
  %vm225 = vcmp.gt.f32.partialorder %v183, 0.0
  %vm226 = vcmp.gt.f32.partialorder %v188, 0.0
  %vm227 = vcmp.gt.f32.partialorder %v193, 0.0
  %vm228 = vcmp.gt.f32.partialorder %v198, 0.0
  %vm229 = vcmp.gt.f32.partialorder %v203, 0.0
  %vm230 = vcmp.gt.f32.partialorder %v208, 0.0
  %vm231 = vcmp.gt.f32.partialorder %v213, 0.0
  %v232 = vmul.f32 %v138, 0.2
  %v233 = vmul.f32 %v143, 0.2
  %v234 = vmul.f32 %v148, 0.2
  %v235 = vmul.f32 %v153, 0.2
  %v236 = vmul.f32 %v158, 0.2
  %v237 = vmul.f32 %v163, 0.2
  %v238 = vmul.f32 %v168, 0.2
  %v239 = vmul.f32 %v173, 0.2
  %v240 = vmul.f32 %v178, 0.2
  %v241 = vmul.f32 %v183, 0.2
  %v242 = vmul.f32 %v188, 0.2
  %v243 = vmul.f32 %v193, 0.2
  %v244 = vmul.f32 %v198, 0.2
  %v245 = vmul.f32 %v203, 0.2
  %v246 = vmul.f32 %v208, 0.2
  %v247 = vmul.f32 %v213, 0.2
  %v248 = vsel %vm216, %v138, %v232
  %v249 = vsel %vm217, %v143, %v233
  %v250 = vsel %vm218, %v148, %v234
  %v251 = vsel %vm219, %v153, %v235
  %v252 = vsel %vm220, %v158, %v236
  %v253 = vsel %vm221, %v163, %v237
  %v254 = vsel %vm222, %v168, %v238
  %v255 = vsel %vm223, %v173, %v239
  %v256 = vsel %vm224, %v178, %v240
  %v257 = vsel %vm225, %v183, %v241
  %v258 = vsel %vm226, %v188, %v242
  %v259 = vsel %vm227, %v193, %v243
  %v260 = vsel %vm228, %v198, %v244
  %v261 = vsel %vm229, %v203, %v245
  %v262 = vsel %vm230, %v208, %v246
  %v263 = vsel %vm231, %v213, %v247
  %v264 = vld [vmem:[%s3] sm:$0xff]
  %v265 = vld [vmem:[%s3 + $0x8] sm:$0xff]
  %v266 = vld [vmem:[%s3 + $0x10] sm:$0xff]
  %v267 = vld [vmem:[%s3 + $0x18] sm:$0xff]
  %v268 = vld [vmem:[%s3 + $0x20] sm:$0xff]
  %v269 = vld [vmem:[%s3 + $0x28] sm:$0xff]
  %v270 = vld [vmem:[%s3 + $0x30] sm:$0xff]
  %v271 = vld [vmem:[%s3 + $0x38] sm:$0xff]
  %v272 = vld [vmem:[%s3 + $0x40] sm:$0xff]
  %v273 = vld [vmem:[%s3 + $0x48] sm:$0xff]
  %v274 = vld [vmem:[%s3 + $0x50] sm:$0xff]
  %v275 = vld [vmem:[%s3 + $0x58] sm:$0xff]
  %v276 = vld [vmem:[%s3 + $0x60] sm:$0xff]
  %v277 = vld [vmem:[%s3 + $0x68] sm:$0xff]
  %v278 = vld [vmem:[%s3 + $0x70] sm:$0xff]
  %v279 = vld [vmem:[%s3 + $0x78] sm:$0xff]
  %v280 = vld [vmem:[%s4] sm:$0x1]
  %v282 = vlaneseq
  %v283 = vshrl.u32 %v282, 7
  %v284 = vsub.s32 0, %v283
  %v285 = vrot.slane %v280, %v284
  %287 = vmatprep.subr.mxu0 0.0
  %288 = vmatpush1.msra.mxu0 %v264
  %289 = vmatprep.subr.mxu0 0.0
  %290 = vmatpush1.msra.mxu0 %v265
  %291 = vmatprep.subr.mxu0 0.0
  %292 = vmatpush1.msra.mxu0 %v266
  %293 = vmatprep.subr.mxu0 0.0
  %294 = vmatpush1.msra.mxu0 %v267
  %295 = vmatprep.subr.mxu0 0.0
  %296 = vmatpush1.msra.mxu0 %v268
  %297 = vmatprep.subr.mxu0 0.0
  %298 = vmatpush1.msra.mxu0 %v269
  %299 = vmatprep.subr.mxu0 0.0
  %300 = vmatpush1.msra.mxu0 %v270
  %301 = vmatprep.subr.mxu0 0.0
  %302 = vmatpush1.msra.mxu0 %v271
  %303 = vmatprep.subr.mxu0 0.0
  %304 = vmatpush1.msra.mxu0 %v272
  %305 = vmatprep.subr.mxu0 0.0
  %306 = vmatpush1.msra.mxu0 %v273
  %307 = vmatprep.subr.mxu0 0.0
  %308 = vmatpush1.msra.mxu0 %v274
  %309 = vmatprep.subr.mxu0 0.0
  %310 = vmatpush1.msra.mxu0 %v275
  %311 = vmatprep.subr.mxu0 0.0
  %312 = vmatpush1.msra.mxu0 %v276
  %313 = vmatprep.subr.mxu0 0.0
  %314 = vmatpush1.msra.mxu0 %v277
  %315 = vmatprep.subr.mxu0 0.0
  %316 = vmatpush1.msra.mxu0 %v278
  %317 = vmatprep.subr.mxu0 0.0
  %318 = vmatpush1.msra.mxu0 %v279
  %319 = vmatprep.subr.mxu0 0.0
  %320 = vmatpush1.msra.mxu0 0.0
  %321 = vmatprep.subr.mxu0 0.0
  %322 = vmatpush1.msra.mxu0 0.0
  %323 = vmatprep.subr.mxu0 0.0
  %324 = vmatpush1.msra.mxu0 0.0
  %325 = vmatprep.subr.mxu0 0.0
  %326 = vmatpush1.msra.mxu0 0.0
  %327 = vmatprep.subr.mxu0 0.0
  %328 = vmatpush1.msra.mxu0 0.0
  %329 = vmatprep.subr.mxu0 0.0
  %330 = vmatpush1.msra.mxu0 0.0
  %331 = vmatprep.subr.mxu0 0.0
  %332 = vmatpush1.msra.mxu0 0.0
  %333 = vmatprep.subr.mxu0 0.0
  %334 = vmatpush1.msra.mxu0 0.0
  %335 = vmatprep.subr.mxu0 0.0
  %336 = vmatpush1.msra.mxu0 0.0
  %337 = vmatprep.subr.mxu0 0.0
  %338 = vmatpush1.msra.mxu0 0.0
  %339 = vmatprep.subr.mxu0 0.0
  %340 = vmatpush1.msra.mxu0 0.0
  %341 = vmatprep.subr.mxu0 0.0
  %342 = vmatpush1.msra.mxu0 0.0
  %343 = vmatprep.subr.mxu0 0.0
  %344 = vmatpush1.msra.mxu0 0.0
  %345 = vmatprep.subr.mxu0 0.0
  %346 = vmatpush1.msra.mxu0 0.0
  %347 = vmatprep.subr.mxu0 0.0
  %348 = vmatpush1.msra.mxu0 0.0
  %349 = vmatprep.subr.mxu0 0.0
  %350 = vmatpush1.msra.mxu0 0.0
  %351 = vmatprep.mubr.f32.mxu0 0.0
  %352 = vmatmul.mubr.f32.gmra.mrb[0].mxu0 %v248
  %v353 = vpop.f32.mrb[0].mxu0
  %v354 = vadd.f32 %v285, %v353
  %v355 = vpop.f32.mrb[0].mxu0
  %356 = vmatprep.mubr.f32.mxu0 0.0
  %357 = vmatmul.mubr.f32.gmra.mrb[0].mxu0 %v249
  %v358 = vpop.f32.mrb[0].mxu0
  %v359 = vadd.f32 %v285, %v358
  %v360 = vpop.f32.mrb[0].mxu0
  %361 = vmatprep.mubr.f32.mxu0 0.0
  %362 = vmatmul.mubr.f32.gmra.mrb[0].mxu0 %v250
  %v363 = vpop.f32.mrb[0].mxu0
  %v364 = vadd.f32 %v285, %v363
  %v365 = vpop.f32.mrb[0].mxu0
  %366 = vmatprep.mubr.f32.mxu0 0.0
  %367 = vmatmul.mubr.f32.gmra.mrb[0].mxu0 %v251
  %v368 = vpop.f32.mrb[0].mxu0
  %v369 = vadd.f32 %v285, %v368
  %v370 = vpop.f32.mrb[0].mxu0
  %371 = vmatprep.mubr.f32.mxu0 0.0
  %372 = vmatmul.mubr.f32.gmra.mrb[0].mxu0 %v252
  %v373 = vpop.f32.mrb[0].mxu0
  %v374 = vadd.f32 %v285, %v373
  %v375 = vpop.f32.mrb[0].mxu0
  %376 = vmatprep.mubr.f32.mxu0 0.0
  %377 = vmatmul.mubr.f32.gmra.mrb[0].mxu0 %v253
  %v378 = vpop.f32.mrb[0].mxu0
  %v379 = vadd.f32 %v285, %v378
  %v380 = vpop.f32.mrb[0].mxu0
  %381 = vmatprep.mubr.f32.mxu0 0.0
  %382 = vmatmul.mubr.f32.gmra.mrb[0].mxu0 %v254
  %v383 = vpop.f32.mrb[0].mxu0
  %v384 = vadd.f32 %v285, %v383
  %v385 = vpop.f32.mrb[0].mxu0
  %386 = vmatprep.mubr.f32.mxu0 0.0
  %387 = vmatmul.mubr.f32.gmra.mrb[0].mxu0 %v255
  %v388 = vpop.f32.mrb[0].mxu0
  %v389 = vadd.f32 %v285, %v388
  %v390 = vpop.f32.mrb[0].mxu0
  %391 = vmatprep.mubr.f32.mxu0 0.0
  %392 = vmatmul.mubr.f32.gmra.mrb[0].mxu0 %v256
  %v393 = vpop.f32.mrb[0].mxu0
  %v394 = vadd.f32 %v285, %v393
  %v395 = vpop.f32.mrb[0].mxu0
  %396 = vmatprep.mubr.f32.mxu0 0.0
  %397 = vmatmul.mubr.f32.gmra.mrb[0].mxu0 %v257
  %v398 = vpop.f32.mrb[0].mxu0
  %v399 = vadd.f32 %v285, %v398
  %v400 = vpop.f32.mrb[0].mxu0
  %401 = vmatprep.mubr.f32.mxu0 0.0
  %402 = vmatmul.mubr.f32.gmra.mrb[0].mxu0 %v258
  %v403 = vpop.f32.mrb[0].mxu0
  %v404 = vadd.f32 %v285, %v403
  %v405 = vpop.f32.mrb[0].mxu0
  %406 = vmatprep.mubr.f32.mxu0 0.0
  %407 = vmatmul.mubr.f32.gmra.mrb[0].mxu0 %v259
  %v408 = vpop.f32.mrb[0].mxu0
  %v409 = vadd.f32 %v285, %v408
  %v410 = vpop.f32.mrb[0].mxu0
  %411 = vmatprep.mubr.f32.mxu0 0.0
  %412 = vmatmul.mubr.f32.gmra.mrb[0].mxu0 %v260
  %v413 = vpop.f32.mrb[0].mxu0
  %v414 = vadd.f32 %v285, %v413
  %v415 = vpop.f32.mrb[0].mxu0
  %416 = vmatprep.mubr.f32.mxu0 0.0
  %417 = vmatmul.mubr.f32.gmra.mrb[0].mxu0 %v261
  %v418 = vpop.f32.mrb[0].mxu0
  %v419 = vadd.f32 %v285, %v418
  %v420 = vpop.f32.mrb[0].mxu0
  %421 = vmatprep.mubr.f32.mxu0 0.0
  %422 = vmatmul.mubr.f32.gmra.mrb[0].mxu0 %v262
  %v423 = vpop.f32.mrb[0].mxu0
  %v424 = vadd.f32 %v285, %v423
  %v425 = vpop.f32.mrb[0].mxu0
  %426 = vmatprep.mubr.f32.mxu0 0.0
  %427 = vmatmul.mubr.f32.gmra.mrb[0].mxu0 %v263
  %v428 = vpop.f32.mrb[0].mxu0
  %v429 = vadd.f32 %v285, %v428
  %v430 = vpop.f32.mrb[0].mxu0
  %431 = vdwg.mxu0
  %vm432 = vcmp.gt.f32.partialorder %v354, 0.0
  %vm433 = vcmp.gt.f32.partialorder %v359, 0.0
  %vm434 = vcmp.gt.f32.partialorder %v364, 0.0
  %vm435 = vcmp.gt.f32.partialorder %v369, 0.0
  %vm436 = vcmp.gt.f32.partialorder %v374, 0.0
  %vm437 = vcmp.gt.f32.partialorder %v379, 0.0
  %vm438 = vcmp.gt.f32.partialorder %v384, 0.0
  %vm439 = vcmp.gt.f32.partialorder %v389, 0.0
  %vm440 = vcmp.gt.f32.partialorder %v394, 0.0
  %vm441 = vcmp.gt.f32.partialorder %v399, 0.0
  %vm442 = vcmp.gt.f32.partialorder %v404, 0.0
  %vm443 = vcmp.gt.f32.partialorder %v409, 0.0
  %vm444 = vcmp.gt.f32.partialorder %v414, 0.0
  %vm445 = vcmp.gt.f32.partialorder %v419, 0.0
  %vm446 = vcmp.gt.f32.partialorder %v424, 0.0
  %vm447 = vcmp.gt.f32.partialorder %v429, 0.0
  %v448 = vmul.f32 %v354, 0.2
  %v449 = vmul.f32 %v359, 0.2
  %v450 = vmul.f32 %v364, 0.2
  %v451 = vmul.f32 %v369, 0.2
  %v452 = vmul.f32 %v374, 0.2
  %v453 = vmul.f32 %v379, 0.2
  %v454 = vmul.f32 %v384, 0.2
  %v455 = vmul.f32 %v389, 0.2
  %v456 = vmul.f32 %v394, 0.2
  %v457 = vmul.f32 %v399, 0.2
  %v458 = vmul.f32 %v404, 0.2
  %v459 = vmul.f32 %v409, 0.2
  %v460 = vmul.f32 %v414, 0.2
  %v461 = vmul.f32 %v419, 0.2
  %v462 = vmul.f32 %v424, 0.2
  %v463 = vmul.f32 %v429, 0.2
  %v464 = vsel %vm432, %v354, %v448
  %v465 = vsel %vm433, %v359, %v449
  %v466 = vsel %vm434, %v364, %v450
  %v467 = vsel %vm435, %v369, %v451
  %v468 = vsel %vm436, %v374, %v452
  %v469 = vsel %vm437, %v379, %v453
  %v470 = vsel %vm438, %v384, %v454
  %v471 = vsel %vm439, %v389, %v455
  %v472 = vsel %vm440, %v394, %v456
  %v473 = vsel %vm441, %v399, %v457
  %v474 = vsel %vm442, %v404, %v458
  %v475 = vsel %vm443, %v409, %v459
  %v476 = vsel %vm444, %v414, %v460
  %v477 = vsel %vm445, %v419, %v461
  %v478 = vsel %vm446, %v424, %v462
  %v479 = vsel %vm447, %v429, %v463
  %v480 = vld [vmem:[%s5] sm:$0xff]
  %v481 = vld [vmem:[%s5 + $0x8] sm:$0xff]
  %v482 = vld [vmem:[%s5 + $0x10] sm:$0xff]
  %v483 = vld [vmem:[%s5 + $0x18] sm:$0xff]
  %v484 = vld [vmem:[%s5 + $0x20] sm:$0xff]
  %v485 = vld [vmem:[%s5 + $0x28] sm:$0xff]
  %v486 = vld [vmem:[%s5 + $0x30] sm:$0xff]
  %v487 = vld [vmem:[%s5 + $0x38] sm:$0xff]
  %v488 = vld [vmem:[%s5 + $0x40] sm:$0xff]
  %v489 = vld [vmem:[%s5 + $0x48] sm:$0xff]
  %v490 = vld [vmem:[%s5 + $0x50] sm:$0xff]
  %v491 = vld [vmem:[%s5 + $0x58] sm:$0xff]
  %v492 = vld [vmem:[%s5 + $0x60] sm:$0xff]
  %v493 = vld [vmem:[%s5 + $0x68] sm:$0xff]
  %v494 = vld [vmem:[%s5 + $0x70] sm:$0xff]
  %v495 = vld [vmem:[%s5 + $0x78] sm:$0xff]
  %v496 = vld [vmem:[%s6] sm:$0x1]
  %v498 = vlaneseq
  %v499 = vshrl.u32 %v498, 7
  %v500 = vsub.s32 0, %v499
  %v501 = vrot.slane %v496, %v500
  %503 = vmatprep.subr.mxu0 0.0
  %504 = vmatpush1.msra.mxu0 %v480
  %505 = vmatprep.subr.mxu0 0.0
  %506 = vmatpush1.msra.mxu0 %v481
  %507 = vmatprep.subr.mxu0 0.0
  %508 = vmatpush1.msra.mxu0 %v482
  %509 = vmatprep.subr.mxu0 0.0
  %510 = vmatpush1.msra.mxu0 %v483
  %511 = vmatprep.subr.mxu0 0.0
  %512 = vmatpush1.msra.mxu0 %v484
  %513 = vmatprep.subr.mxu0 0.0
  %514 = vmatpush1.msra.mxu0 %v485
  %515 = vmatprep.subr.mxu0 0.0
  %516 = vmatpush1.msra.mxu0 %v486
  %517 = vmatprep.subr.mxu0 0.0
  %518 = vmatpush1.msra.mxu0 %v487
  %519 = vmatprep.subr.mxu0 0.0
  %520 = vmatpush1.msra.mxu0 %v488
  %521 = vmatprep.subr.mxu0 0.0
  %522 = vmatpush1.msra.mxu0 %v489
  %523 = vmatprep.subr.mxu0 0.0
  %524 = vmatpush1.msra.mxu0 %v490
  %525 = vmatprep.subr.mxu0 0.0
  %526 = vmatpush1.msra.mxu0 %v491
  %527 = vmatprep.subr.mxu0 0.0
  %528 = vmatpush1.msra.mxu0 %v492
  %529 = vmatprep.subr.mxu0 0.0
  %530 = vmatpush1.msra.mxu0 %v493
  %531 = vmatprep.subr.mxu0 0.0
  %532 = vmatpush1.msra.mxu0 %v494
  %533 = vmatprep.subr.mxu0 0.0
  %534 = vmatpush1.msra.mxu0 %v495
  %535 = vmatprep.subr.mxu0 0.0
  %536 = vmatpush1.msra.mxu0 0.0
  %537 = vmatprep.subr.mxu0 0.0
  %538 = vmatpush1.msra.mxu0 0.0
  %539 = vmatprep.subr.mxu0 0.0
  %540 = vmatpush1.msra.mxu0 0.0
  %541 = vmatprep.subr.mxu0 0.0
  %542 = vmatpush1.msra.mxu0 0.0
  %543 = vmatprep.subr.mxu0 0.0
  %544 = vmatpush1.msra.mxu0 0.0
  %545 = vmatprep.subr.mxu0 0.0
  %546 = vmatpush1.msra.mxu0 0.0
  %547 = vmatprep.subr.mxu0 0.0
  %548 = vmatpush1.msra.mxu0 0.0
  %549 = vmatprep.subr.mxu0 0.0
  %550 = vmatpush1.msra.mxu0 0.0
  %551 = vmatprep.subr.mxu0 0.0
  %552 = vmatpush1.msra.mxu0 0.0
  %553 = vmatprep.subr.mxu0 0.0
  %554 = vmatpush1.msra.mxu0 0.0
  %555 = vmatprep.subr.mxu0 0.0
  %556 = vmatpush1.msra.mxu0 0.0
  %557 = vmatprep.subr.mxu0 0.0
  %558 = vmatpush1.msra.mxu0 0.0
  %559 = vmatprep.subr.mxu0 0.0
  %560 = vmatpush1.msra.mxu0 0.0
  %561 = vmatprep.subr.mxu0 0.0
  %562 = vmatpush1.msra.mxu0 0.0
  %563 = vmatprep.subr.mxu0 0.0
  %564 = vmatpush1.msra.mxu0 0.0
  %565 = vmatprep.subr.mxu0 0.0
  %566 = vmatpush1.msra.mxu0 0.0
  %567 = vmatprep.mubr.f32.mxu0 0.0
  %568 = vmatmul.mubr.f32.gmra.mrb[0].mxu0 %v464
  %v569 = vpop.f32.mrb[0].mxu0
  %v570 = vadd.f32 %v501, %v569
  %v571 = vpop.f32.mrb[0].mxu0
  %572 = vmatprep.mubr.f32.mxu0 0.0
  %573 = vmatmul.mubr.f32.gmra.mrb[0].mxu0 %v465
  %v574 = vpop.f32.mrb[0].mxu0
  %v575 = vadd.f32 %v501, %v574
  %v576 = vpop.f32.mrb[0].mxu0
  %577 = vmatprep.mubr.f32.mxu0 0.0
  %578 = vmatmul.mubr.f32.gmra.mrb[0].mxu0 %v466
  %v579 = vpop.f32.mrb[0].mxu0
  %v580 = vadd.f32 %v501, %v579
  %v581 = vpop.f32.mrb[0].mxu0
  %582 = vmatprep.mubr.f32.mxu0 0.0
  %583 = vmatmul.mubr.f32.gmra.mrb[0].mxu0 %v467
  %v584 = vpop.f32.mrb[0].mxu0
  %v585 = vadd.f32 %v501, %v584
  %v586 = vpop.f32.mrb[0].mxu0
  %587 = vmatprep.mubr.f32.mxu0 0.0
  %588 = vmatmul.mubr.f32.gmra.mrb[0].mxu0 %v468
  %v589 = vpop.f32.mrb[0].mxu0
  %v590 = vadd.f32 %v501, %v589
  %v591 = vpop.f32.mrb[0].mxu0
  %592 = vmatprep.mubr.f32.mxu0 0.0
  %593 = vmatmul.mubr.f32.gmra.mrb[0].mxu0 %v469
  %v594 = vpop.f32.mrb[0].mxu0
  %v595 = vadd.f32 %v501, %v594
  %v596 = vpop.f32.mrb[0].mxu0
  %597 = vmatprep.mubr.f32.mxu0 0.0
  %598 = vmatmul.mubr.f32.gmra.mrb[0].mxu0 %v470
  %v599 = vpop.f32.mrb[0].mxu0
  %v600 = vadd.f32 %v501, %v599
  %v601 = vpop.f32.mrb[0].mxu0
  %602 = vmatprep.mubr.f32.mxu0 0.0
  %603 = vmatmul.mubr.f32.gmra.mrb[0].mxu0 %v471
  %v604 = vpop.f32.mrb[0].mxu0
  %v605 = vadd.f32 %v501, %v604
  %v606 = vpop.f32.mrb[0].mxu0
  %607 = vmatprep.mubr.f32.mxu0 0.0
  %608 = vmatmul.mubr.f32.gmra.mrb[0].mxu0 %v472
  %v609 = vpop.f32.mrb[0].mxu0
  %v610 = vadd.f32 %v501, %v609
  %v611 = vpop.f32.mrb[0].mxu0
  %612 = vmatprep.mubr.f32.mxu0 0.0
  %613 = vmatmul.mubr.f32.gmra.mrb[0].mxu0 %v473
  %v614 = vpop.f32.mrb[0].mxu0
  %v615 = vadd.f32 %v501, %v614
  %v616 = vpop.f32.mrb[0].mxu0
  %617 = vmatprep.mubr.f32.mxu0 0.0
  %618 = vmatmul.mubr.f32.gmra.mrb[0].mxu0 %v474
  %v619 = vpop.f32.mrb[0].mxu0
  %v620 = vadd.f32 %v501, %v619
  %v621 = vpop.f32.mrb[0].mxu0
  %622 = vmatprep.mubr.f32.mxu0 0.0
  %623 = vmatmul.mubr.f32.gmra.mrb[0].mxu0 %v475
  %v624 = vpop.f32.mrb[0].mxu0
  %v625 = vadd.f32 %v501, %v624
  %v626 = vpop.f32.mrb[0].mxu0
  %627 = vmatprep.mubr.f32.mxu0 0.0
  %628 = vmatmul.mubr.f32.gmra.mrb[0].mxu0 %v476
  %v629 = vpop.f32.mrb[0].mxu0
  %v630 = vadd.f32 %v501, %v629
  %v631 = vpop.f32.mrb[0].mxu0
  %632 = vmatprep.mubr.f32.mxu0 0.0
  %633 = vmatmul.mubr.f32.gmra.mrb[0].mxu0 %v477
  %v634 = vpop.f32.mrb[0].mxu0
  %v635 = vadd.f32 %v501, %v634
  %v636 = vpop.f32.mrb[0].mxu0
  %637 = vmatprep.mubr.f32.mxu0 0.0
  %638 = vmatmul.mubr.f32.gmra.mrb[0].mxu0 %v478
  %v639 = vpop.f32.mrb[0].mxu0
  %v640 = vadd.f32 %v501, %v639
  %v641 = vpop.f32.mrb[0].mxu0
  %642 = vmatprep.mubr.f32.mxu0 0.0
  %643 = vmatmul.mubr.f32.gmra.mrb[0].mxu0 %v479
  %v644 = vpop.f32.mrb[0].mxu0
  %v645 = vadd.f32 %v501, %v644
  %v646 = vpop.f32.mrb[0].mxu0
  %647 = vdwg.mxu0
  %vm648 = vcmp.gt.f32.partialorder %v570, 0.0
  %vm649 = vcmp.gt.f32.partialorder %v575, 0.0
  %vm650 = vcmp.gt.f32.partialorder %v580, 0.0
  %vm651 = vcmp.gt.f32.partialorder %v585, 0.0
  %vm652 = vcmp.gt.f32.partialorder %v590, 0.0
  %vm653 = vcmp.gt.f32.partialorder %v595, 0.0
  %vm654 = vcmp.gt.f32.partialorder %v600, 0.0
  %vm655 = vcmp.gt.f32.partialorder %v605, 0.0
  %vm656 = vcmp.gt.f32.partialorder %v610, 0.0
  %vm657 = vcmp.gt.f32.partialorder %v615, 0.0
  %vm658 = vcmp.gt.f32.partialorder %v620, 0.0
  %vm659 = vcmp.gt.f32.partialorder %v625, 0.0
  %vm660 = vcmp.gt.f32.partialorder %v630, 0.0
  %vm661 = vcmp.gt.f32.partialorder %v635, 0.0
  %vm662 = vcmp.gt.f32.partialorder %v640, 0.0
  %vm663 = vcmp.gt.f32.partialorder %v645, 0.0
  %v664 = vmul.f32 %v570, 0.2
  %v665 = vmul.f32 %v575, 0.2
  %v666 = vmul.f32 %v580, 0.2
  %v667 = vmul.f32 %v585, 0.2
  %v668 = vmul.f32 %v590, 0.2
  %v669 = vmul.f32 %v595, 0.2
  %v670 = vmul.f32 %v600, 0.2
  %v671 = vmul.f32 %v605, 0.2
  %v672 = vmul.f32 %v610, 0.2
  %v673 = vmul.f32 %v615, 0.2
  %v674 = vmul.f32 %v620, 0.2
  %v675 = vmul.f32 %v625, 0.2
  %v676 = vmul.f32 %v630, 0.2
  %v677 = vmul.f32 %v635, 0.2
  %v678 = vmul.f32 %v640, 0.2
  %v679 = vmul.f32 %v645, 0.2
  %v680 = vsel %vm648, %v570, %v664
  %v681 = vsel %vm649, %v575, %v665
  %v682 = vsel %vm650, %v580, %v666
  %v683 = vsel %vm651, %v585, %v667
  %v684 = vsel %vm652, %v590, %v668
  %v685 = vsel %vm653, %v595, %v669
  %v686 = vsel %vm654, %v600, %v670
  %v687 = vsel %vm655, %v605, %v671
  %v688 = vsel %vm656, %v610, %v672
  %v689 = vsel %vm657, %v615, %v673
  %v690 = vsel %vm658, %v620, %v674
  %v691 = vsel %vm659, %v625, %v675
  %v692 = vsel %vm660, %v630, %v676
  %v693 = vsel %vm661, %v635, %v677
  %v694 = vsel %vm662, %v640, %v678
  %v695 = vsel %vm663, %v645, %v679
  %v696 = vld [vmem:[%s7] sm:$0xff]
  %v697 = vld [vmem:[%s7 + $0x8] sm:$0xff]
  %v698 = vld [vmem:[%s7 + $0x10] sm:$0xff]
  %v699 = vld [vmem:[%s7 + $0x18] sm:$0xff]
  %v700 = vld [vmem:[%s7 + $0x20] sm:$0xff]
  %v701 = vld [vmem:[%s7 + $0x28] sm:$0xff]
  %v702 = vld [vmem:[%s7 + $0x30] sm:$0xff]
  %v703 = vld [vmem:[%s7 + $0x38] sm:$0xff]
  %v704 = vld [vmem:[%s7 + $0x40] sm:$0xff]
  %v705 = vld [vmem:[%s7 + $0x48] sm:$0xff]
  %v706 = vld [vmem:[%s7 + $0x50] sm:$0xff]
  %v707 = vld [vmem:[%s7 + $0x58] sm:$0xff]
  %v708 = vld [vmem:[%s7 + $0x60] sm:$0xff]
  %v709 = vld [vmem:[%s7 + $0x68] sm:$0xff]
  %v710 = vld [vmem:[%s7 + $0x70] sm:$0xff]
  %v711 = vld [vmem:[%s7 + $0x78] sm:$0xff]
  %v712 = vld [vmem:[%s8] sm:$0x1]
  %v714 = vlaneseq
  %v715 = vshrl.u32 %v714, 7
  %v716 = vsub.s32 0, %v715
  %v717 = vrot.slane %v712, %v716
  %719 = vmatprep.subr.mxu0 0.0
  %720 = vmatpush1.msra.mxu0 %v696
  %721 = vmatprep.subr.mxu0 0.0
  %722 = vmatpush1.msra.mxu0 %v697
  %723 = vmatprep.subr.mxu0 0.0
  %724 = vmatpush1.msra.mxu0 %v698
  %725 = vmatprep.subr.mxu0 0.0
  %726 = vmatpush1.msra.mxu0 %v699
  %727 = vmatprep.subr.mxu0 0.0
  %728 = vmatpush1.msra.mxu0 %v700
  %729 = vmatprep.subr.mxu0 0.0
  %730 = vmatpush1.msra.mxu0 %v701
  %731 = vmatprep.subr.mxu0 0.0
  %732 = vmatpush1.msra.mxu0 %v702
  %733 = vmatprep.subr.mxu0 0.0
  %734 = vmatpush1.msra.mxu0 %v703
  %735 = vmatprep.subr.mxu0 0.0
  %736 = vmatpush1.msra.mxu0 %v704
  %737 = vmatprep.subr.mxu0 0.0
  %738 = vmatpush1.msra.mxu0 %v705
  %739 = vmatprep.subr.mxu0 0.0
  %740 = vmatpush1.msra.mxu0 %v706
  %741 = vmatprep.subr.mxu0 0.0
  %742 = vmatpush1.msra.mxu0 %v707
  %743 = vmatprep.subr.mxu0 0.0
  %744 = vmatpush1.msra.mxu0 %v708
  %745 = vmatprep.subr.mxu0 0.0
  %746 = vmatpush1.msra.mxu0 %v709
  %747 = vmatprep.subr.mxu0 0.0
  %748 = vmatpush1.msra.mxu0 %v710
  %749 = vmatprep.subr.mxu0 0.0
  %750 = vmatpush1.msra.mxu0 %v711
  %751 = vmatprep.subr.mxu0 0.0
  %752 = vmatpush1.msra.mxu0 0.0
  %753 = vmatprep.subr.mxu0 0.0
  %754 = vmatpush1.msra.mxu0 0.0
  %755 = vmatprep.subr.mxu0 0.0
  %756 = vmatpush1.msra.mxu0 0.0
  %757 = vmatprep.subr.mxu0 0.0
  %758 = vmatpush1.msra.mxu0 0.0
  %759 = vmatprep.subr.mxu0 0.0
  %760 = vmatpush1.msra.mxu0 0.0
  %761 = vmatprep.subr.mxu0 0.0
  %762 = vmatpush1.msra.mxu0 0.0
  %763 = vmatprep.subr.mxu0 0.0
  %764 = vmatpush1.msra.mxu0 0.0
  %765 = vmatprep.subr.mxu0 0.0
  %766 = vmatpush1.msra.mxu0 0.0
  %767 = vmatprep.subr.mxu0 0.0
  %768 = vmatpush1.msra.mxu0 0.0
  %769 = vmatprep.subr.mxu0 0.0
  %770 = vmatpush1.msra.mxu0 0.0
  %771 = vmatprep.subr.mxu0 0.0
  %772 = vmatpush1.msra.mxu0 0.0
  %773 = vmatprep.subr.mxu0 0.0
  %774 = vmatpush1.msra.mxu0 0.0
  %775 = vmatprep.subr.mxu0 0.0
  %776 = vmatpush1.msra.mxu0 0.0
  %777 = vmatprep.subr.mxu0 0.0
  %778 = vmatpush1.msra.mxu0 0.0
  %779 = vmatprep.subr.mxu0 0.0
  %780 = vmatpush1.msra.mxu0 0.0
  %781 = vmatprep.subr.mxu0 0.0
  %782 = vmatpush1.msra.mxu0 0.0
  %783 = vmatprep.mubr.f32.mxu0 0.0
  %784 = vmatmul.mubr.f32.gmra.mrb[0].mxu0 %v680
  %v785 = vpop.f32.mrb[0].mxu0
  %v786 = vadd.f32 %v717, %v785
  %v787 = vpop.f32.mrb[0].mxu0
  %788 = vmatprep.mubr.f32.mxu0 0.0
  %789 = vmatmul.mubr.f32.gmra.mrb[0].mxu0 %v681
  %v790 = vpop.f32.mrb[0].mxu0
  %v791 = vadd.f32 %v717, %v790
  %v792 = vpop.f32.mrb[0].mxu0
  %793 = vmatprep.mubr.f32.mxu0 0.0
  %794 = vmatmul.mubr.f32.gmra.mrb[0].mxu0 %v682
  %v795 = vpop.f32.mrb[0].mxu0
  %v796 = vadd.f32 %v717, %v795
  %v797 = vpop.f32.mrb[0].mxu0
  %798 = vmatprep.mubr.f32.mxu0 0.0
  %799 = vmatmul.mubr.f32.gmra.mrb[0].mxu0 %v683
  %v800 = vpop.f32.mrb[0].mxu0
  %v801 = vadd.f32 %v717, %v800
  %v802 = vpop.f32.mrb[0].mxu0
  %803 = vmatprep.mubr.f32.mxu0 0.0
  %804 = vmatmul.mubr.f32.gmra.mrb[0].mxu0 %v684
  %v805 = vpop.f32.mrb[0].mxu0
  %v806 = vadd.f32 %v717, %v805
  %v807 = vpop.f32.mrb[0].mxu0
  %808 = vmatprep.mubr.f32.mxu0 0.0
  %809 = vmatmul.mubr.f32.gmra.mrb[0].mxu0 %v685
  %v810 = vpop.f32.mrb[0].mxu0
  %v811 = vadd.f32 %v717, %v810
  %v812 = vpop.f32.mrb[0].mxu0
  %813 = vmatprep.mubr.f32.mxu0 0.0
  %814 = vmatmul.mubr.f32.gmra.mrb[0].mxu0 %v686
  %v815 = vpop.f32.mrb[0].mxu0
  %v816 = vadd.f32 %v717, %v815
  %v817 = vpop.f32.mrb[0].mxu0
  %818 = vmatprep.mubr.f32.mxu0 0.0
  %819 = vmatmul.mubr.f32.gmra.mrb[0].mxu0 %v687
  %v820 = vpop.f32.mrb[0].mxu0
  %v821 = vadd.f32 %v717, %v820
  %v822 = vpop.f32.mrb[0].mxu0
  %823 = vmatprep.mubr.f32.mxu0 0.0
  %824 = vmatmul.mubr.f32.gmra.mrb[0].mxu0 %v688
  %v825 = vpop.f32.mrb[0].mxu0
  %v826 = vadd.f32 %v717, %v825
  %v827 = vpop.f32.mrb[0].mxu0
  %828 = vmatprep.mubr.f32.mxu0 0.0
  %829 = vmatmul.mubr.f32.gmra.mrb[0].mxu0 %v689
  %v830 = vpop.f32.mrb[0].mxu0
  %v831 = vadd.f32 %v717, %v830
  %v832 = vpop.f32.mrb[0].mxu0
  %833 = vmatprep.mubr.f32.mxu0 0.0
  %834 = vmatmul.mubr.f32.gmra.mrb[0].mxu0 %v690
  %v835 = vpop.f32.mrb[0].mxu0
  %v836 = vadd.f32 %v717, %v835
  %v837 = vpop.f32.mrb[0].mxu0
  %838 = vmatprep.mubr.f32.mxu0 0.0
  %839 = vmatmul.mubr.f32.gmra.mrb[0].mxu0 %v691
  %v840 = vpop.f32.mrb[0].mxu0
  %v841 = vadd.f32 %v717, %v840
  %v842 = vpop.f32.mrb[0].mxu0
  %843 = vmatprep.mubr.f32.mxu0 0.0
  %844 = vmatmul.mubr.f32.gmra.mrb[0].mxu0 %v692
  %v845 = vpop.f32.mrb[0].mxu0
  %v846 = vadd.f32 %v717, %v845
  %v847 = vpop.f32.mrb[0].mxu0
  %848 = vmatprep.mubr.f32.mxu0 0.0
  %849 = vmatmul.mubr.f32.gmra.mrb[0].mxu0 %v693
  %v850 = vpop.f32.mrb[0].mxu0
  %v851 = vadd.f32 %v717, %v850
  %v852 = vpop.f32.mrb[0].mxu0
  %853 = vmatprep.mubr.f32.mxu0 0.0
  %854 = vmatmul.mubr.f32.gmra.mrb[0].mxu0 %v694
  %v855 = vpop.f32.mrb[0].mxu0
  %v856 = vadd.f32 %v717, %v855
  %v857 = vpop.f32.mrb[0].mxu0
  %858 = vmatprep.mubr.f32.mxu0 0.0
  %859 = vmatmul.mubr.f32.gmra.mrb[0].mxu0 %v695
  %v860 = vpop.f32.mrb[0].mxu0
  %v861 = vadd.f32 %v717, %v860
  %v862 = vpop.f32.mrb[0].mxu0
  %863 = vdwg.mxu0
  %864 = vxpose.xlu0.b32.start [1/16] %v786, 128
  %865 = vxpose.xlu0.b32.cont [2/16] %v791, 128
  %866 = vxpose.xlu0.b32.cont [3/16] %v796, 128
  %867 = vxpose.xlu0.b32.cont [4/16] %v801, 128
  %868 = vxpose.xlu0.b32.cont [5/16] %v806, 128
  %869 = vxpose.xlu0.b32.cont [6/16] %v811, 128
  %870 = vxpose.xlu0.b32.cont [7/16] %v816, 128
  %871 = vxpose.xlu0.b32.cont [8/16] %v821, 128
  %872 = vxpose.xlu0.b32.cont [9/16] %v826, 128
  %873 = vxpose.xlu0.b32.cont [10/16] %v831, 128
  %874 = vxpose.xlu0.b32.cont [11/16] %v836, 128
  %875 = vxpose.xlu0.b32.cont [12/16] %v841, 128
  %876 = vxpose.xlu0.b32.cont [13/16] %v846, 128
  %877 = vxpose.xlu0.b32.cont [14/16] %v851, 128
  %878 = vxpose.xlu0.b32.cont [15/16] %v856, 128
  %879 = vxpose.xlu0.b32.end [16/16] %v861, 128
  %v880 = vpop.trf.xlu0
  %v881 = vpop.trf.xlu0
  %v882 = vpop.trf.xlu0
  %v883 = vpop.trf.xlu0
  %v884 = vpop.trf.xlu0
  %v885 = vpop.trf.xlu0
  %v886 = vpop.trf.xlu0
  %v887 = vpop.trf.xlu0
  %v888 = vpop.trf.xlu0
  %v889 = vpop.trf.xlu0
  %v890 = vpop.trf.xlu0
  %v891 = vpop.trf.xlu0
  %v892 = vpop.trf.xlu0
  %v893 = vpop.trf.xlu0
  %v894 = vpop.trf.xlu0
  %v895 = vpop.trf.xlu0
  %v896 = vsub.f32 0.0, %v880
  %v897 = vmul.f32 %v896, 1.442695
  %v898 = vpow.pop %v897
  %v899 = vadd.f32 %v898, 1.0
  %v900 = vrcp.pop %v899
  %901 = vst [vmem:[%s9] sm:$0x1] %v900
  // Predicated region
  $region38: #{discriminator_forward.1} parent=0 // pred_check
    _
  $region39: #{discriminator_forward.1} parent=0 // pred_check_branch
    %903 = sbr.rel (0) target = $region41
  $region40: #{discriminator_forward.1} parent=0 // pred_region
    _
  $region41: #{discriminator_forward.1} parent=0 // pred_fallthru
    _
  // Predicated region
  $region42: #{discriminator_forward.1} parent=0 // pred_check
    _
  $region43: #{discriminator_forward.1} parent=0 // pred_check_branch
    %905 = sbr.rel (0) target = $region45
  $region44: #{discriminator_forward.1} parent=0 // pred_region
    _
  $region45: #{discriminator_forward.1} parent=0 // pred_fallthru
    _

// kernel: discriminator_forward.1
$region0: #{discriminator_forward.1}
  #allocation0 [shape = 'u32[]', space=smem, size = 0x4, offset = 0x4, fixed_abs, tag = 'smem constant byte address 0x4 - core index']
  #allocation1 [shape = 'u32[144,128]{1,0:T(1,128)}', space=vmem, size = 0x12000, scoped, tag = 'internal scratch']
  %s0 = inlined_call_operand.vmem [shape: f32[128,128], index: 0, kind: input, shape index: {}]
  %s1 = inlined_call_operand.vmem [shape: f32[128,128], index: 1, kind: input, shape index: {}]
  %s2 = inlined_call_operand.vmem [shape: f32[1,128], index: 2, kind: input, shape index: {}]
  %s3 = inlined_call_operand.vmem [shape: f32[128,128], index: 3, kind: input, shape index: {}]
  %s4 = inlined_call_operand.vmem [shape: f32[1,128], index: 4, kind: input, shape index: {}]
  %s5 = inlined_call_operand.vmem [shape: f32[128,128], index: 5, kind: input, shape index: {}]
  %s6 = inlined_call_operand.vmem [shape: f32[1,128], index: 6, kind: input, shape index: {}]
  %s7 = inlined_call_operand.vmem [shape: f32[128,128], index: 7, kind: input, shape index: {}]
  %s8 = inlined_call_operand.vmem [shape: f32[1,128], index: 8, kind: input, shape index: {}]
  %s9 = inlined_call_operand.vmem [shape: f32[1,128], index: 9, kind: output, shape index: {}]
  %s10 = sld [smem:[#allocation0]]
  $region46: #{discriminator_forward.1} parent=0
    _
  %s12 = ssub.s32 1, %s10
  %s13 = scalar_select 0, %s12, %s10
  // Predicated region
  $region2: #{discriminator_forward.1} parent=0 // pred_check
    _
  $region3: #{discriminator_forward.1} parent=0 // pred_check_branch
    %15 = sbr.rel (0) target = $region5
  $region4: #{discriminator_forward.1} parent=0 // pred_region
    _
  $region5: #{discriminator_forward.1} parent=0 // pred_fallthru
    _
  // Predicated region
  $region6: #{discriminator_forward.1} parent=0 // pred_check
    _
  $region7: #{discriminator_forward.1} parent=0 // pred_check_branch
    %17 = sbr.rel (0) target = $region9
  $region8: #{discriminator_forward.1} parent=0 // pred_region
    _
  $region9: #{discriminator_forward.1} parent=0 // pred_fallthru
    _
  // Predicated region
  $region10: #{discriminator_forward.1} parent=0 // pred_check
    _
  $region11: #{discriminator_forward.1} parent=0 // pred_check_branch
    %19 = sbr.rel (0) target = $region13
  $region12: #{discriminator_forward.1} parent=0 // pred_region
    _
  $region13: #{discriminator_forward.1} parent=0 // pred_fallthru
    _
  // Predicated region
  $region14: #{discriminator_forward.1} parent=0 // pred_check
    _
  $region15: #{discriminator_forward.1} parent=0 // pred_check_branch
    %21 = sbr.rel (0) target = $region17
  $region16: #{discriminator_forward.1} parent=0 // pred_region
    _
  $region17: #{discriminator_forward.1} parent=0 // pred_fallthru
    _
  // Predicated region
  $region18: #{discriminator_forward.1} parent=0 // pred_check
    _
  $region19: #{discriminator_forward.1} parent=0 // pred_check_branch
    %23 = sbr.rel (0) target = $region21
  $region20: #{discriminator_forward.1} parent=0 // pred_region
    _
  $region21: #{discriminator_forward.1} parent=0 // pred_fallthru
    _
  // Predicated region
  $region22: #{discriminator_forward.1} parent=0 // pred_check
    _
  $region23: #{discriminator_forward.1} parent=0 // pred_check_branch
    %25 = sbr.rel (0) target = $region25
  $region24: #{discriminator_forward.1} parent=0 // pred_region
    _
  $region25: #{discriminator_forward.1} parent=0 // pred_fallthru
    _
  // Predicated region
  $region26: #{discriminator_forward.1} parent=0 // pred_check
    _
  $region27: #{discriminator_forward.1} parent=0 // pred_check_branch
    %27 = sbr.rel (0) target = $region29
  $region28: #{discriminator_forward.1} parent=0 // pred_region
    _
  $region29: #{discriminator_forward.1} parent=0 // pred_fallthru
    _
  // Predicated region
  $region30: #{discriminator_forward.1} parent=0 // pred_check
    _
  $region31: #{discriminator_forward.1} parent=0 // pred_check_branch
    %29 = sbr.rel (0) target = $region33
  $region32: #{discriminator_forward.1} parent=0 // pred_region
    _
  $region33: #{discriminator_forward.1} parent=0 // pred_fallthru
    _
  // Predicated region
  $region34: #{discriminator_forward.1} parent=0 // pred_check
    _
  $region35: #{discriminator_forward.1} parent=0 // pred_check_branch
    %31 = sbr.rel (0) target = $region37
  $region36: #{discriminator_forward.1} parent=0 // pred_region
    _
  $region37: #{discriminator_forward.1} parent=0 // pred_fallthru
    _
  %v32 = vld [vmem:[%s0] sm:$0xff]
  %v33 = vld [vmem:[%s0 + $0x8] sm:$0xff]
  %v34 = vld [vmem:[%s0 + $0x10] sm:$0xff]
  %v35 = vld [vmem:[%s0 + $0x18] sm:$0xff]
  %v36 = vld [vmem:[%s0 + $0x20] sm:$0xff]
  %v37 = vld [vmem:[%s0 + $0x28] sm:$0xff]
  %v38 = vld [vmem:[%s0 + $0x30] sm:$0xff]
  %v39 = vld [vmem:[%s0 + $0x38] sm:$0xff]
  %v40 = vld [vmem:[%s0 + $0x40] sm:$0xff]
  %v41 = vld [vmem:[%s0 + $0x48] sm:$0xff]
  %v42 = vld [vmem:[%s0 + $0x50] sm:$0xff]
  %v43 = vld [vmem:[%s0 + $0x58] sm:$0xff]
  %v44 = vld [vmem:[%s0 + $0x60] sm:$0xff]
  %v45 = vld [vmem:[%s0 + $0x68] sm:$0xff]
  %v46 = vld [vmem:[%s0 + $0x70] sm:$0xff]
  %v47 = vld [vmem:[%s0 + $0x78] sm:$0xff]
  %v48 = vld [vmem:[%s1] sm:$0xff]
  %v49 = vld [vmem:[%s1 + $0x8] sm:$0xff]
  %v50 = vld [vmem:[%s1 + $0x10] sm:$0xff]
  %v51 = vld [vmem:[%s1 + $0x18] sm:$0xff]
  %v52 = vld [vmem:[%s1 + $0x20] sm:$0xff]
  %v53 = vld [vmem:[%s1 + $0x28] sm:$0xff]
  %v54 = vld [vmem:[%s1 + $0x30] sm:$0xff]
  %v55 = vld [vmem:[%s1 + $0x38] sm:$0xff]
  %v56 = vld [vmem:[%s1 + $0x40] sm:$0xff]
  %v57 = vld [vmem:[%s1 + $0x48] sm:$0xff]
  %v58 = vld [vmem:[%s1 + $0x50] sm:$0xff]
  %v59 = vld [vmem:[%s1 + $0x58] sm:$0xff]
  %v60 = vld [vmem:[%s1 + $0x60] sm:$0xff]
  %v61 = vld [vmem:[%s1 + $0x68] sm:$0xff]
  %v62 = vld [vmem:[%s1 + $0x70] sm:$0xff]
  %v63 = vld [vmem:[%s1 + $0x78] sm:$0xff]
  %v64 = vld [vmem:[%s2] sm:$0x1]
  %v66 = vlaneseq
  %v67 = vshrl.u32 %v66, 7
  %v68 = vsub.s32 0, %v67
  %v69 = vrot.slane %v64, %v68
  %71 = vmatprep.subr.mxu0 0.0
  %72 = vmatpush1.msra.mxu0 %v48
  %73 = vmatprep.subr.mxu0 0.0
  %74 = vmatpush1.msra.mxu0 %v49
  %75 = vmatprep.subr.mxu0 0.0
  %76 = vmatpush1.msra.mxu0 %v50
  %77 = vmatprep.subr.mxu0 0.0
  %78 = vmatpush1.msra.mxu0 %v51
  %79 = vmatprep.subr.mxu0 0.0
  %80 = vmatpush1.msra.mxu0 %v52
  %81 = vmatprep.subr.mxu0 0.0
  %82 = vmatpush1.msra.mxu0 %v53
  %83 = vmatprep.subr.mxu0 0.0
  %84 = vmatpush1.msra.mxu0 %v54
  %85 = vmatprep.subr.mxu0 0.0
  %86 = vmatpush1.msra.mxu0 %v55
  %87 = vmatprep.subr.mxu0 0.0
  %88 = vmatpush1.msra.mxu0 %v56
  %89 = vmatprep.subr.mxu0 0.0
  %90 = vmatpush1.msra.mxu0 %v57
  %91 = vmatprep.subr.mxu0 0.0
  %92 = vmatpush1.msra.mxu0 %v58
  %93 = vmatprep.subr.mxu0 0.0
  %94 = vmatpush1.msra.mxu0 %v59
  %95 = vmatprep.subr.mxu0 0.0
  %96 = vmatpush1.msra.mxu0 %v60
  %97 = vmatprep.subr.mxu0 0.0
  %98 = vmatpush1.msra.mxu0 %v61
  %99 = vmatprep.subr.mxu0 0.0
  %100 = vmatpush1.msra.mxu0 %v62
  %101 = vmatprep.subr.mxu0 0.0
  %102 = vmatpush1.msra.mxu0 %v63
  %103 = vmatprep.subr.mxu0 0.0
  %104 = vmatpush1.msra.mxu0 0.0
  %105 = vmatprep.subr.mxu0 0.0
  %106 = vmatpush1.msra.mxu0 0.0
  %107 = vmatprep.subr.mxu0 0.0
  %108 = vmatpush1.msra.mxu0 0.0
  %109 = vmatprep.subr.mxu0 0.0
  %110 = vmatpush1.msra.mxu0 0.0
  %111 = vmatprep.subr.mxu0 0.0
  %112 = vmatpush1.msra.mxu0 0.0
  %113 = vmatprep.subr.mxu0 0.0
  %114 = vmatpush1.msra.mxu0 0.0
  %115 = vmatprep.subr.mxu0 0.0
  %116 = vmatpush1.msra.mxu0 0.0
  %117 = vmatprep.subr.mxu0 0.0
  %118 = vmatpush1.msra.mxu0 0.0
  %119 = vmatprep.subr.mxu0 0.0
  %120 = vmatpush1.msra.mxu0 0.0
  %121 = vmatprep.subr.mxu0 0.0
  %122 = vmatpush1.msra.mxu0 0.0
  %123 = vmatprep.subr.mxu0 0.0
  %124 = vmatpush1.msra.mxu0 0.0
  %125 = vmatprep.subr.mxu0 0.0
  %126 = vmatpush1.msra.mxu0 0.0
  %127 = vmatprep.subr.mxu0 0.0
  %128 = vmatpush1.msra.mxu0 0.0
  %129 = vmatprep.subr.mxu0 0.0
  %130 = vmatpush1.msra.mxu0 0.0
  %131 = vmatprep.subr.mxu0 0.0
  %132 = vmatpush1.msra.mxu0 0.0
  %133 = vmatprep.subr.mxu0 0.0
  %134 = vmatpush1.msra.mxu0 0.0
  %135 = vmatprep.mubr.f32.mxu0 0.0
  %136 = vmatmul.mubr.f32.gmra.mrb[0].mxu0 %v32
  %v137 = vpop.f32.mrb[0].mxu0
  %v138 = vadd.f32 %v69, %v137
  %v139 = vpop.f32.mrb[0].mxu0
  %140 = vmatprep.mubr.f32.mxu0 0.0
  %141 = vmatmul.mubr.f32.gmra.mrb[0].mxu0 %v33
  %v142 = vpop.f32.mrb[0].mxu0
  %v143 = vadd.f32 %v69, %v142
  %v144 = vpop.f32.mrb[0].mxu0
  %145 = vmatprep.mubr.f32.mxu0 0.0
  %146 = vmatmul.mubr.f32.gmra.mrb[0].mxu0 %v34
  %v147 = vpop.f32.mrb[0].mxu0
  %v148 = vadd.f32 %v69, %v147
  %v149 = vpop.f32.mrb[0].mxu0
  %150 = vmatprep.mubr.f32.mxu0 0.0
  %151 = vmatmul.mubr.f32.gmra.mrb[0].mxu0 %v35
  %v152 = vpop.f32.mrb[0].mxu0
  %v153 = vadd.f32 %v69, %v152
  %v154 = vpop.f32.mrb[0].mxu0
  %155 = vmatprep.mubr.f32.mxu0 0.0
  %156 = vmatmul.mubr.f32.gmra.mrb[0].mxu0 %v36
  %v157 = vpop.f32.mrb[0].mxu0
  %v158 = vadd.f32 %v69, %v157
  %v159 = vpop.f32.mrb[0].mxu0
  %160 = vmatprep.mubr.f32.mxu0 0.0
  %161 = vmatmul.mubr.f32.gmra.mrb[0].mxu0 %v37
  %v162 = vpop.f32.mrb[0].mxu0
  %v163 = vadd.f32 %v69, %v162
  %v164 = vpop.f32.mrb[0].mxu0
  %165 = vmatprep.mubr.f32.mxu0 0.0
  %166 = vmatmul.mubr.f32.gmra.mrb[0].mxu0 %v38
  %v167 = vpop.f32.mrb[0].mxu0
  %v168 = vadd.f32 %v69, %v167
  %v169 = vpop.f32.mrb[0].mxu0
  %170 = vmatprep.mubr.f32.mxu0 0.0
  %171 = vmatmul.mubr.f32.gmra.mrb[0].mxu0 %v39
  %v172 = vpop.f32.mrb[0].mxu0
  %v173 = vadd.f32 %v69, %v172
  %v174 = vpop.f32.mrb[0].mxu0
  %175 = vmatprep.mubr.f32.mxu0 0.0
  %176 = vmatmul.mubr.f32.gmra.mrb[0].mxu0 %v40
  %v177 = vpop.f32.mrb[0].mxu0
  %v178 = vadd.f32 %v69, %v177
  %v179 = vpop.f32.mrb[0].mxu0
  %180 = vmatprep.mubr.f32.mxu0 0.0
  %181 = vmatmul.mubr.f32.gmra.mrb[0].mxu0 %v41
  %v182 = vpop.f32.mrb[0].mxu0
  %v183 = vadd.f32 %v69, %v182
  %v184 = vpop.f32.mrb[0].mxu0
  %185 = vmatprep.mubr.f32.mxu0 0.0
  %186 = vmatmul.mubr.f32.gmra.mrb[0].mxu0 %v42
  %v187 = vpop.f32.mrb[0].mxu0
  %v188 = vadd.f32 %v69, %v187
  %v189 = vpop.f32.mrb[0].mxu0
  %190 = vmatprep.mubr.f32.mxu0 0.0
  %191 = vmatmul.mubr.f32.gmra.mrb[0].mxu0 %v43
  %v192 = vpop.f32.mrb[0].mxu0
  %v193 = vadd.f32 %v69, %v192
  %v194 = vpop.f32.mrb[0].mxu0
  %195 = vmatprep.mubr.f32.mxu0 0.0
  %196 = vmatmul.mubr.f32.gmra.mrb[0].mxu0 %v44
  %v197 = vpop.f32.mrb[0].mxu0
  %v198 = vadd.f32 %v69, %v197
  %v199 = vpop.f32.mrb[0].mxu0
  %200 = vmatprep.mubr.f32.mxu0 0.0
  %201 = vmatmul.mubr.f32.gmra.mrb[0].mxu0 %v45
  %v202 = vpop.f32.mrb[0].mxu0
  %v203 = vadd.f32 %v69, %v202
  %v204 = vpop.f32.mrb[0].mxu0
  %205 = vmatprep.mubr.f32.mxu0 0.0
  %206 = vmatmul.mubr.f32.gmra.mrb[0].mxu0 %v46
  %v207 = vpop.f32.mrb[0].mxu0
  %v208 = vadd.f32 %v69, %v207
  %v209 = vpop.f32.mrb[0].mxu0
  %210 = vmatprep.mubr.f32.mxu0 0.0
  %211 = vmatmul.mubr.f32.gmra.mrb[0].mxu0 %v47
  %v212 = vpop.f32.mrb[0].mxu0
  %v213 = vadd.f32 %v69, %v212
  %v214 = vpop.f32.mrb[0].mxu0
  %215 = vdwg.mxu0
  %vm216 = vcmp.gt.f32.partialorder %v138, 0.0
  %vm217 = vcmp.gt.f32.partialorder %v143, 0.0
  %vm218 = vcmp.gt.f32.partialorder %v148, 0.0
  %vm219 = vcmp.gt.f32.partialorder %v153, 0.0
  %vm220 = vcmp.gt.f32.partialorder %v158, 0.0
  %vm221 = vcmp.gt.f32.partialorder %v163, 0.0
  %vm222 = vcmp.gt.f32.partialorder %v168, 0.0
  %vm223 = vcmp.gt.f32.partialorder %v173, 0.0
  %vm224 = vcmp.gt.f32.partialorder %v178, 0.0
  %vm225 = vcmp.gt.f32.partialorder %v183, 0.0
  %vm226 = vcmp.gt.f32.partialorder %v188, 0.0
  %vm227 = vcmp.gt.f32.partialorder %v193, 0.0
  %vm228 = vcmp.gt.f32.partialorder %v198, 0.0
  %vm229 = vcmp.gt.f32.partialorder %v203, 0.0
  %vm230 = vcmp.gt.f32.partialorder %v208, 0.0
  %vm231 = vcmp.gt.f32.partialorder %v213, 0.0
  %v232 = vmul.f32 %v138, 0.2
  %v233 = vmul.f32 %v143, 0.2
  %v234 = vmul.f32 %v148, 0.2
  %v235 = vmul.f32 %v153, 0.2
  %v236 = vmul.f32 %v158, 0.2
  %v237 = vmul.f32 %v163, 0.2
  %v238 = vmul.f32 %v168, 0.2
  %v239 = vmul.f32 %v173, 0.2
  %v240 = vmul.f32 %v178, 0.2
  %v241 = vmul.f32 %v183, 0.2
  %v242 = vmul.f32 %v188, 0.2
  %v243 = vmul.f32 %v193, 0.2
  %v244 = vmul.f32 %v198, 0.2
  %v245 = vmul.f32 %v203, 0.2
  %v246 = vmul.f32 %v208, 0.2
  %v247 = vmul.f32 %v213, 0.2
  %v248 = vsel %vm216, %v138, %v232
  %v249 = vsel %vm217, %v143, %v233
  %v250 = vsel %vm218, %v148, %v234
  %v251 = vsel %vm219, %v153, %v235
  %v252 = vsel %vm220, %v158, %v236
  %v253 = vsel %vm221, %v163, %v237
  %v254 = vsel %vm222, %v168, %v238
  %v255 = vsel %vm223, %v173, %v239
  %v256 = vsel %vm224, %v178, %v240
  %v257 = vsel %vm225, %v183, %v241
  %v258 = vsel %vm226, %v188, %v242
  %v259 = vsel %vm227, %v193, %v243
  %v260 = vsel %vm228, %v198, %v244
  %v261 = vsel %vm229, %v203, %v245
  %v262 = vsel %vm230, %v208, %v246
  %v263 = vsel %vm231, %v213, %v247
  %v264 = vld [vmem:[%s3] sm:$0xff]
  %v265 = vld [vmem:[%s3 + $0x8] sm:$0xff]
  %v266 = vld [vmem:[%s3 + $0x10] sm:$0xff]
  %v267 = vld [vmem:[%s3 + $0x18] sm:$0xff]
  %v268 = vld [vmem:[%s3 + $0x20] sm:$0xff]
  %v269 = vld [vmem:[%s3 + $0x28] sm:$0xff]
  %v270 = vld [vmem:[%s3 + $0x30] sm:$0xff]
  %v271 = vld [vmem:[%s3 + $0x38] sm:$0xff]
  %v272 = vld [vmem:[%s3 + $0x40] sm:$0xff]
  %v273 = vld [vmem:[%s3 + $0x48] sm:$0xff]
  %v274 = vld [vmem:[%s3 + $0x50] sm:$0xff]
  %v275 = vld [vmem:[%s3 + $0x58] sm:$0xff]
  %v276 = vld [vmem:[%s3 + $0x60] sm:$0xff]
  %v277 = vld [vmem:[%s3 + $0x68] sm:$0xff]
  %v278 = vld [vmem:[%s3 + $0x70] sm:$0xff]
  %v279 = vld [vmem:[%s3 + $0x78] sm:$0xff]
  %v280 = vld [vmem:[%s4] sm:$0x1]
  %v282 = vlaneseq
  %v283 = vshrl.u32 %v282, 7
  %v284 = vsub.s32 0, %v283
  %v285 = vrot.slane %v280, %v284
  %287 = vmatprep.subr.mxu0 0.0
  %288 = vmatpush1.msra.mxu0 %v264
  %289 = vmatprep.subr.mxu0 0.0
  %290 = vmatpush1.msra.mxu0 %v265
  %291 = vmatprep.subr.mxu0 0.0
  %292 = vmatpush1.msra.mxu0 %v266
  %293 = vmatprep.subr.mxu0 0.0
  %294 = vmatpush1.msra.mxu0 %v267
  %295 = vmatprep.subr.mxu0 0.0
  %296 = vmatpush1.msra.mxu0 %v268
  %297 = vmatprep.subr.mxu0 0.0
  %298 = vmatpush1.msra.mxu0 %v269
  %299 = vmatprep.subr.mxu0 0.0
  %300 = vmatpush1.msra.mxu0 %v270
  %301 = vmatprep.subr.mxu0 0.0
  %302 = vmatpush1.msra.mxu0 %v271
  %303 = vmatprep.subr.mxu0 0.0
  %304 = vmatpush1.msra.mxu0 %v272
  %305 = vmatprep.subr.mxu0 0.0
  %306 = vmatpush1.msra.mxu0 %v273
  %307 = vmatprep.subr.mxu0 0.0
  %308 = vmatpush1.msra.mxu0 %v274
  %309 = vmatprep.subr.mxu0 0.0
  %310 = vmatpush1.msra.mxu0 %v275
  %311 = vmatprep.subr.mxu0 0.0
  %312 = vmatpush1.msra.mxu0 %v276
  %313 = vmatprep.subr.mxu0 0.0
  %314 = vmatpush1.msra.mxu0 %v277
  %315 = vmatprep.subr.mxu0 0.0
  %316 = vmatpush1.msra.mxu0 %v278
  %317 = vmatprep.subr.mxu0 0.0
  %318 = vmatpush1.msra.mxu0 %v279
  %319 = vmatprep.subr.mxu0 0.0
  %320 = vmatpush1.msra.mxu0 0.0
  %321 = vmatprep.subr.mxu0 0.0
  %322 = vmatpush1.msra.mxu0 0.0
  %323 = vmatprep.subr.mxu0 0.0
  %324 = vmatpush1.msra.mxu0 0.0
  %325 = vmatprep.subr.mxu0 0.0
  %326 = vmatpush1.msra.mxu0 0.0
  %327 = vmatprep.subr.mxu0 0.0
  %328 = vmatpush1.msra.mxu0 0.0
  %329 = vmatprep.subr.mxu0 0.0
  %330 = vmatpush1.msra.mxu0 0.0
  %331 = vmatprep.subr.mxu0 0.0
  %332 = vmatpush1.msra.mxu0 0.0
  %333 = vmatprep.subr.mxu0 0.0
  %334 = vmatpush1.msra.mxu0 0.0
  %335 = vmatprep.subr.mxu0 0.0
  %336 = vmatpush1.msra.mxu0 0.0
  %337 = vmatprep.subr.mxu0 0.0
  %338 = vmatpush1.msra.mxu0 0.0
  %339 = vmatprep.subr.mxu0 0.0
  %340 = vmatpush1.msra.mxu0 0.0
  %341 = vmatprep.subr.mxu0 0.0
  %342 = vmatpush1.msra.mxu0 0.0
  %343 = vmatprep.subr.mxu0 0.0
  %344 = vmatpush1.msra.mxu0 0.0
  %345 = vmatprep.subr.mxu0 0.0
  %346 = vmatpush1.msra.mxu0 0.0
  %347 = vmatprep.subr.mxu0 0.0
  %348 = vmatpush1.msra.mxu0 0.0
  %349 = vmatprep.subr.mxu0 0.0
  %350 = vmatpush1.msra.mxu0 0.0
  %351 = vmatprep.mubr.f32.mxu0 0.0
  %352 = vmatmul.mubr.f32.gmra.mrb[0].mxu0 %v248
  %v353 = vpop.f32.mrb[0].mxu0
  %v354 = vadd.f32 %v285, %v353
  %v355 = vpop.f32.mrb[0].mxu0
  %356 = vmatprep.mubr.f32.mxu0 0.0
  %357 = vmatmul.mubr.f32.gmra.mrb[0].mxu0 %v249
  %v358 = vpop.f32.mrb[0].mxu0
  %v359 = vadd.f32 %v285, %v358
  %v360 = vpop.f32.mrb[0].mxu0
  %361 = vmatprep.mubr.f32.mxu0 0.0
  %362 = vmatmul.mubr.f32.gmra.mrb[0].mxu0 %v250
  %v363 = vpop.f32.mrb[0].mxu0
  %v364 = vadd.f32 %v285, %v363
  %v365 = vpop.f32.mrb[0].mxu0
  %366 = vmatprep.mubr.f32.mxu0 0.0
  %367 = vmatmul.mubr.f32.gmra.mrb[0].mxu0 %v251
  %v368 = vpop.f32.mrb[0].mxu0
  %v369 = vadd.f32 %v285, %v368
  %v370 = vpop.f32.mrb[0].mxu0
  %371 = vmatprep.mubr.f32.mxu0 0.0
  %372 = vmatmul.mubr.f32.gmra.mrb[0].mxu0 %v252
  %v373 = vpop.f32.mrb[0].mxu0
  %v374 = vadd.f32 %v285, %v373
  %v375 = vpop.f32.mrb[0].mxu0
  %376 = vmatprep.mubr.f32.mxu0 0.0
  %377 = vmatmul.mubr.f32.gmra.mrb[0].mxu0 %v253
  %v378 = vpop.f32.mrb[0].mxu0
  %v379 = vadd.f32 %v285, %v378
  %v380 = vpop.f32.mrb[0].mxu0
  %381 = vmatprep.mubr.f32.mxu0 0.0
  %382 = vmatmul.mubr.f32.gmra.mrb[0].mxu0 %v254
  %v383 = vpop.f32.mrb[0].mxu0
  %v384 = vadd.f32 %v285, %v383
  %v385 = vpop.f32.mrb[0].mxu0
  %386 = vmatprep.mubr.f32.mxu0 0.0
  %387 = vmatmul.mubr.f32.gmra.mrb[0].mxu0 %v255
  %v388 = vpop.f32.mrb[0].mxu0
  %v389 = vadd.f32 %v285, %v388
  %v390 = vpop.f32.mrb[0].mxu0
  %391 = vmatprep.mubr.f32.mxu0 0.0
  %392 = vmatmul.mubr.f32.gmra.mrb[0].mxu0 %v256
  %v393 = vpop.f32.mrb[0].mxu0
  %v394 = vadd.f32 %v285, %v393
  %v395 = vpop.f32.mrb[0].mxu0
  %396 = vmatprep.mubr.f32.mxu0 0.0
  %397 = vmatmul.mubr.f32.gmra.mrb[0].mxu0 %v257
  %v398 = vpop.f32.mrb[0].mxu0
  %v399 = vadd.f32 %v285, %v398
  %v400 = vpop.f32.mrb[0].mxu0
  %401 = vmatprep.mubr.f32.mxu0 0.0
  %402 = vmatmul.mubr.f32.gmra.mrb[0].mxu0 %v258
  %v403 = vpop.f32.mrb[0].mxu0
  %v404 = vadd.f32 %v285, %v403
  %v405 = vpop.f32.mrb[0].mxu0
  %406 = vmatprep.mubr.f32.mxu0 0.0
  %407 = vmatmul.mubr.f32.gmra.mrb[0].mxu0 %v259
  %v408 = vpop.f32.mrb[0].mxu0
  %v409 = vadd.f32 %v285, %v408
  %v410 = vpop.f32.mrb[0].mxu0
  %411 = vmatprep.mubr.f32.mxu0 0.0
  %412 = vmatmul.mubr.f32.gmra.mrb[0].mxu0 %v260
  %v413 = vpop.f32.mrb[0].mxu0
  %v414 = vadd.f32 %v285, %v413
  %v415 = vpop.f32.mrb[0].mxu0
  %416 = vmatprep.mubr.f32.mxu0 0.0
  %417 = vmatmul.mubr.f32.gmra.mrb[0].mxu0 %v261
  %v418 = vpop.f32.mrb[0].mxu0
  %v419 = vadd.f32 %v285, %v418
  %v420 = vpop.f32.mrb[0].mxu0
  %421 = vmatprep.mubr.f32.mxu0 0.0
  %422 = vmatmul.mubr.f32.gmra.mrb[0].mxu0 %v262
  %v423 = vpop.f32.mrb[0].mxu0
  %v424 = vadd.f32 %v285, %v423
  %v425 = vpop.f32.mrb[0].mxu0
  %426 = vmatprep.mubr.f32.mxu0 0.0
  %427 = vmatmul.mubr.f32.gmra.mrb[0].mxu0 %v263
  %v428 = vpop.f32.mrb[0].mxu0
  %v429 = vadd.f32 %v285, %v428
  %v430 = vpop.f32.mrb[0].mxu0
  %431 = vdwg.mxu0
  %vm432 = vcmp.gt.f32.partialorder %v354, 0.0
  %vm433 = vcmp.gt.f32.partialorder %v359, 0.0
  %vm434 = vcmp.gt.f32.partialorder %v364, 0.0
  %vm435 = vcmp.gt.f32.partialorder %v369, 0.0
  %vm436 = vcmp.gt.f32.partialorder %v374, 0.0
  %vm437 = vcmp.gt.f32.partialorder %v379, 0.0
  %vm438 = vcmp.gt.f32.partialorder %v384, 0.0
  %vm439 = vcmp.gt.f32.partialorder %v389, 0.0
  %vm440 = vcmp.gt.f32.partialorder %v394, 0.0
  %vm441 = vcmp.gt.f32.partialorder %v399, 0.0
  %vm442 = vcmp.gt.f32.partialorder %v404, 0.0
  %vm443 = vcmp.gt.f32.partialorder %v409, 0.0
  %vm444 = vcmp.gt.f32.partialorder %v414, 0.0
  %vm445 = vcmp.gt.f32.partialorder %v419, 0.0
  %vm446 = vcmp.gt.f32.partialorder %v424, 0.0
  %vm447 = vcmp.gt.f32.partialorder %v429, 0.0
  %v448 = vmul.f32 %v354, 0.2
  %v449 = vmul.f32 %v359, 0.2
  %v450 = vmul.f32 %v364, 0.2
  %v451 = vmul.f32 %v369, 0.2
  %v452 = vmul.f32 %v374, 0.2
  %v453 = vmul.f32 %v379, 0.2
  %v454 = vmul.f32 %v384, 0.2
  %v455 = vmul.f32 %v389, 0.2
  %v456 = vmul.f32 %v394, 0.2
  %v457 = vmul.f32 %v399, 0.2
  %v458 = vmul.f32 %v404, 0.2
  %v459 = vmul.f32 %v409, 0.2
  %v460 = vmul.f32 %v414, 0.2
  %v461 = vmul.f32 %v419, 0.2
  %v462 = vmul.f32 %v424, 0.2
  %v463 = vmul.f32 %v429, 0.2
  %v464 = vsel %vm432, %v354, %v448
  %v465 = vsel %vm433, %v359, %v449
  %v466 = vsel %vm434, %v364, %v450
  %v467 = vsel %vm435, %v369, %v451
  %v468 = vsel %vm436, %v374, %v452
  %v469 = vsel %vm437, %v379, %v453
  %v470 = vsel %vm438, %v384, %v454
  %v471 = vsel %vm439, %v389, %v455
  %v472 = vsel %vm440, %v394, %v456
  %v473 = vsel %vm441, %v399, %v457
  %v474 = vsel %vm442, %v404, %v458
  %v475 = vsel %vm443, %v409, %v459
  %v476 = vsel %vm444, %v414, %v460
  %v477 = vsel %vm445, %v419, %v461
  %v478 = vsel %vm446, %v424, %v462
  %v479 = vsel %vm447, %v429, %v463
  %v480 = vld [vmem:[%s5] sm:$0xff]
  %v481 = vld [vmem:[%s5 + $0x8] sm:$0xff]
  %v482 = vld [vmem:[%s5 + $0x10] sm:$0xff]
  %v483 = vld [vmem:[%s5 + $0x18] sm:$0xff]
  %v484 = vld [vmem:[%s5 + $0x20] sm:$0xff]
  %v485 = vld [vmem:[%s5 + $0x28] sm:$0xff]
  %v486 = vld [vmem:[%s5 + $0x30] sm:$0xff]
  %v487 = vld [vmem:[%s5 + $0x38] sm:$0xff]
  %v488 = vld [vmem:[%s5 + $0x40] sm:$0xff]
  %v489 = vld [vmem:[%s5 + $0x48] sm:$0xff]
  %v490 = vld [vmem:[%s5 + $0x50] sm:$0xff]
  %v491 = vld [vmem:[%s5 + $0x58] sm:$0xff]
  %v492 = vld [vmem:[%s5 + $0x60] sm:$0xff]
  %v493 = vld [vmem:[%s5 + $0x68] sm:$0xff]
  %v494 = vld [vmem:[%s5 + $0x70] sm:$0xff]
  %v495 = vld [vmem:[%s5 + $0x78] sm:$0xff]
  %v496 = vld [vmem:[%s6] sm:$0x1]
  %v498 = vlaneseq
  %v499 = vshrl.u32 %v498, 7
  %v500 = vsub.s32 0, %v499
  %v501 = vrot.slane %v496, %v500
  %503 = vmatprep.subr.mxu0 0.0
  %504 = vmatpush1.msra.mxu0 %v480
  %505 = vmatprep.subr.mxu0 0.0
  %506 = vmatpush1.msra.mxu0 %v481
  %507 = vmatprep.subr.mxu0 0.0
  %508 = vmatpush1.msra.mxu0 %v482
  %509 = vmatprep.subr.mxu0 0.0
  %510 = vmatpush1.msra.mxu0 %v483
  %511 = vmatprep.subr.mxu0 0.0
  %512 = vmatpush1.msra.mxu0 %v484
  %513 = vmatprep.subr.mxu0 0.0
  %514 = vmatpush1.msra.mxu0 %v485
  %515 = vmatprep.subr.mxu0 0.0
  %516 = vmatpush1.msra.mxu0 %v486
  %517 = vmatprep.subr.mxu0 0.0
  %518 = vmatpush1.msra.mxu0 %v487
  %519 = vmatprep.subr.mxu0 0.0
  %520 = vmatpush1.msra.mxu0 %v488
  %521 = vmatprep.subr.mxu0 0.0
  %522 = vmatpush1.msra.mxu0 %v489
  %523 = vmatprep.subr.mxu0 0.0
  %524 = vmatpush1.msra.mxu0 %v490
  %525 = vmatprep.subr.mxu0 0.0
  %526 = vmatpush1.msra.mxu0 %v491
  %527 = vmatprep.subr.mxu0 0.0
  %528 = vmatpush1.msra.mxu0 %v492
  %529 = vmatprep.subr.mxu0 0.0
  %530 = vmatpush1.msra.mxu0 %v493
  %531 = vmatprep.subr.mxu0 0.0
  %532 = vmatpush1.msra.mxu0 %v494
  %533 = vmatprep.subr.mxu0 0.0
  %534 = vmatpush1.msra.mxu0 %v495
  %535 = vmatprep.subr.mxu0 0.0
  %536 = vmatpush1.msra.mxu0 0.0
  %537 = vmatprep.subr.mxu0 0.0
  %538 = vmatpush1.msra.mxu0 0.0
  %539 = vmatprep.subr.mxu0 0.0
  %540 = vmatpush1.msra.mxu0 0.0
  %541 = vmatprep.subr.mxu0 0.0
  %542 = vmatpush1.msra.mxu0 0.0
  %543 = vmatprep.subr.mxu0 0.0
  %544 = vmatpush1.msra.mxu0 0.0
  %545 = vmatprep.subr.mxu0 0.0
  %546 = vmatpush1.msra.mxu0 0.0
  %547 = vmatprep.subr.mxu0 0.0
  %548 = vmatpush1.msra.mxu0 0.0
  %549 = vmatprep.subr.mxu0 0.0
  %550 = vmatpush1.msra.mxu0 0.0
  %551 = vmatprep.subr.mxu0 0.0
  %552 = vmatpush1.msra.mxu0 0.0
  %553 = vmatprep.subr.mxu0 0.0
  %554 = vmatpush1.msra.mxu0 0.0
  %555 = vmatprep.subr.mxu0 0.0
  %556 = vmatpush1.msra.mxu0 0.0
  %557 = vmatprep.subr.mxu0 0.0
  %558 = vmatpush1.msra.mxu0 0.0
  %559 = vmatprep.subr.mxu0 0.0
  %560 = vmatpush1.msra.mxu0 0.0
  %561 = vmatprep.subr.mxu0 0.0
  %562 = vmatpush1.msra.mxu0 0.0
  %563 = vmatprep.subr.mxu0 0.0
  %564 = vmatpush1.msra.mxu0 0.0
  %565 = vmatprep.subr.mxu0 0.0
  %566 = vmatpush1.msra.mxu0 0.0
  %567 = vmatprep.mubr.f32.mxu0 0.0
  %568 = vmatmul.mubr.f32.gmra.mrb[0].mxu0 %v464
  %v569 = vpop.f32.mrb[0].mxu0
  %v570 = vadd.f32 %v501, %v569
  %v571 = vpop.f32.mrb[0].mxu0
  %572 = vmatprep.mubr.f32.mxu0 0.0
  %573 = vmatmul.mubr.f32.gmra.mrb[0].mxu0 %v465
  %v574 = vpop.f32.mrb[0].mxu0
  %v575 = vadd.f32 %v501, %v574
  %v576 = vpop.f32.mrb[0].mxu0
  %577 = vmatprep.mubr.f32.mxu0 0.0
  %578 = vmatmul.mubr.f32.gmra.mrb[0].mxu0 %v466
  %v579 = vpop.f32.mrb[0].mxu0
  %v580 = vadd.f32 %v501, %v579
  %v581 = vpop.f32.mrb[0].mxu0
  %582 = vmatprep.mubr.f32.mxu0 0.0
  %583 = vmatmul.mubr.f32.gmra.mrb[0].mxu0 %v467
  %v584 = vpop.f32.mrb[0].mxu0
  %v585 = vadd.f32 %v501, %v584
  %v586 = vpop.f32.mrb[0].mxu0
  %587 = vmatprep.mubr.f32.mxu0 0.0
  %588 = vmatmul.mubr.f32.gmra.mrb[0].mxu0 %v468
  %v589 = vpop.f32.mrb[0].mxu0
  %v590 = vadd.f32 %v501, %v589
  %v591 = vpop.f32.mrb[0].mxu0
  %592 = vmatprep.mubr.f32.mxu0 0.0
  %593 = vmatmul.mubr.f32.gmra.mrb[0].mxu0 %v469
  %v594 = vpop.f32.mrb[0].mxu0
  %v595 = vadd.f32 %v501, %v594
  %v596 = vpop.f32.mrb[0].mxu0
  %597 = vmatprep.mubr.f32.mxu0 0.0
  %598 = vmatmul.mubr.f32.gmra.mrb[0].mxu0 %v470
  %v599 = vpop.f32.mrb[0].mxu0
  %v600 = vadd.f32 %v501, %v599
  %v601 = vpop.f32.mrb[0].mxu0
  %602 = vmatprep.mubr.f32.mxu0 0.0
  %603 = vmatmul.mubr.f32.gmra.mrb[0].mxu0 %v471
  %v604 = vpop.f32.mrb[0].mxu0
  %v605 = vadd.f32 %v501, %v604
  %v606 = vpop.f32.mrb[0].mxu0
  %607 = vmatprep.mubr.f32.mxu0 0.0
  %608 = vmatmul.mubr.f32.gmra.mrb[0].mxu0 %v472
  %v609 = vpop.f32.mrb[0].mxu0
  %v610 = vadd.f32 %v501, %v609
  %v611 = vpop.f32.mrb[0].mxu0
  %612 = vmatprep.mubr.f32.mxu0 0.0
  %613 = vmatmul.mubr.f32.gmra.mrb[0].mxu0 %v473
  %v614 = vpop.f32.mrb[0].mxu0
  %v615 = vadd.f32 %v501, %v614
  %v616 = vpop.f32.mrb[0].mxu0
  %617 = vmatprep.mubr.f32.mxu0 0.0
  %618 = vmatmul.mubr.f32.gmra.mrb[0].mxu0 %v474
  %v619 = vpop.f32.mrb[0].mxu0
  %v620 = vadd.f32 %v501, %v619
  %v621 = vpop.f32.mrb[0].mxu0
  %622 = vmatprep.mubr.f32.mxu0 0.0
  %623 = vmatmul.mubr.f32.gmra.mrb[0].mxu0 %v475
  %v624 = vpop.f32.mrb[0].mxu0
  %v625 = vadd.f32 %v501, %v624
  %v626 = vpop.f32.mrb[0].mxu0
  %627 = vmatprep.mubr.f32.mxu0 0.0
  %628 = vmatmul.mubr.f32.gmra.mrb[0].mxu0 %v476
  %v629 = vpop.f32.mrb[0].mxu0
  %v630 = vadd.f32 %v501, %v629
  %v631 = vpop.f32.mrb[0].mxu0
  %632 = vmatprep.mubr.f32.mxu0 0.0
  %633 = vmatmul.mubr.f32.gmra.mrb[0].mxu0 %v477
  %v634 = vpop.f32.mrb[0].mxu0
  %v635 = vadd.f32 %v501, %v634
  %v636 = vpop.f32.mrb[0].mxu0
  %637 = vmatprep.mubr.f32.mxu0 0.0
  %638 = vmatmul.mubr.f32.gmra.mrb[0].mxu0 %v478
  %v639 = vpop.f32.mrb[0].mxu0
  %v640 = vadd.f32 %v501, %v639
  %v641 = vpop.f32.mrb[0].mxu0
  %642 = vmatprep.mubr.f32.mxu0 0.0
  %643 = vmatmul.mubr.f32.gmra.mrb[0].mxu0 %v479
  %v644 = vpop.f32.mrb[0].mxu0
  %v645 = vadd.f32 %v501, %v644
  %v646 = vpop.f32.mrb[0].mxu0
  %647 = vdwg.mxu0
  %vm648 = vcmp.gt.f32.partialorder %v570, 0.0
  %vm649 = vcmp.gt.f32.partialorder %v575, 0.0
  %vm650 = vcmp.gt.f32.partialorder %v580, 0.0
  %vm651 = vcmp.gt.f32.partialorder %v585, 0.0
  %vm652 = vcmp.gt.f32.partialorder %v590, 0.0
  %vm653 = vcmp.gt.f32.partialorder %v595, 0.0
  %vm654 = vcmp.gt.f32.partialorder %v600, 0.0
  %vm655 = vcmp.gt.f32.partialorder %v605, 0.0
  %vm656 = vcmp.gt.f32.partialorder %v610, 0.0
  %vm657 = vcmp.gt.f32.partialorder %v615, 0.0
  %vm658 = vcmp.gt.f32.partialorder %v620, 0.0
  %vm659 = vcmp.gt.f32.partialorder %v625, 0.0
  %vm660 = vcmp.gt.f32.partialorder %v630, 0.0
  %vm661 = vcmp.gt.f32.partialorder %v635, 0.0
  %vm662 = vcmp.gt.f32.partialorder %v640, 0.0
  %vm663 = vcmp.gt.f32.partialorder %v645, 0.0
  %v664 = vmul.f32 %v570, 0.2
  %v665 = vmul.f32 %v575, 0.2
  %v666 = vmul.f32 %v580, 0.2
  %v667 = vmul.f32 %v585, 0.2
  %v668 = vmul.f32 %v590, 0.2
  %v669 = vmul.f32 %v595, 0.2
  %v670 = vmul.f32 %v600, 0.2
  %v671 = vmul.f32 %v605, 0.2
  %v672 = vmul.f32 %v610, 0.2
  %v673 = vmul.f32 %v615, 0.2
  %v674 = vmul.f32 %v620, 0.2
  %v675 = vmul.f32 %v625, 0.2
  %v676 = vmul.f32 %v630, 0.2
  %v677 = vmul.f32 %v635, 0.2
  %v678 = vmul.f32 %v640, 0.2
  %v679 = vmul.f32 %v645, 0.2
  %v680 = vsel %vm648, %v570, %v664
  %v681 = vsel %vm649, %v575, %v665
  %v682 = vsel %vm650, %v580, %v666
  %v683 = vsel %vm651, %v585, %v667
  %v684 = vsel %vm652, %v590, %v668
  %v685 = vsel %vm653, %v595, %v669
  %v686 = vsel %vm654, %v600, %v670
  %v687 = vsel %vm655, %v605, %v671
  %v688 = vsel %vm656, %v610, %v672
  %v689 = vsel %vm657, %v615, %v673
  %v690 = vsel %vm658, %v620, %v674
  %v691 = vsel %vm659, %v625, %v675
  %v692 = vsel %vm660, %v630, %v676
  %v693 = vsel %vm661, %v635, %v677
  %v694 = vsel %vm662, %v640, %v678
  %v695 = vsel %vm663, %v645, %v679
  %v696 = vld [vmem:[%s7] sm:$0xff]
  %v697 = vld [vmem:[%s7 + $0x8] sm:$0xff]
  %v698 = vld [vmem:[%s7 + $0x10] sm:$0xff]
  %v699 = vld [vmem:[%s7 + $0x18] sm:$0xff]
  %v700 = vld [vmem:[%s7 + $0x20] sm:$0xff]
  %v701 = vld [vmem:[%s7 + $0x28] sm:$0xff]
  %v702 = vld [vmem:[%s7 + $0x30] sm:$0xff]
  %v703 = vld [vmem:[%s7 + $0x38] sm:$0xff]
  %v704 = vld [vmem:[%s7 + $0x40] sm:$0xff]
  %v705 = vld [vmem:[%s7 + $0x48] sm:$0xff]
  %v706 = vld [vmem:[%s7 + $0x50] sm:$0xff]
  %v707 = vld [vmem:[%s7 + $0x58] sm:$0xff]
  %v708 = vld [vmem:[%s7 + $0x60] sm:$0xff]
  %v709 = vld [vmem:[%s7 + $0x68] sm:$0xff]
  %v710 = vld [vmem:[%s7 + $0x70] sm:$0xff]
  %v711 = vld [vmem:[%s7 + $0x78] sm:$0xff]
  %v712 = vld [vmem:[%s8] sm:$0x1]
  %v714 = vlaneseq
  %v715 = vshrl.u32 %v714, 7
  %v716 = vsub.s32 0, %v715
  %v717 = vrot.slane %v712, %v716
  %719 = vmatprep.subr.mxu0 0.0
  %720 = vmatpush1.msra.mxu0 %v696
  %721 = vmatprep.subr.mxu0 0.0
  %722 = vmatpush1.msra.mxu0 %v697
  %723 = vmatprep.subr.mxu0 0.0
  %724 = vmatpush1.msra.mxu0 %v698
  %725 = vmatprep.subr.mxu0 0.0
  %726 = vmatpush1.msra.mxu0 %v699
  %727 = vmatprep.subr.mxu0 0.0
  %728 = vmatpush1.msra.mxu0 %v700
  %729 = vmatprep.subr.mxu0 0.0
  %730 = vmatpush1.msra.mxu0 %v701
  %731 = vmatprep.subr.mxu0 0.0
  %732 = vmatpush1.msra.mxu0 %v702
  %733 = vmatprep.subr.mxu0 0.0
  %734 = vmatpush1.msra.mxu0 %v703
  %735 = vmatprep.subr.mxu0 0.0
  %736 = vmatpush1.msra.mxu0 %v704
  %737 = vmatprep.subr.mxu0 0.0
  %738 = vmatpush1.msra.mxu0 %v705
  %739 = vmatprep.subr.mxu0 0.0
  %740 = vmatpush1.msra.mxu0 %v706
  %741 = vmatprep.subr.mxu0 0.0
  %742 = vmatpush1.msra.mxu0 %v707
  %743 = vmatprep.subr.mxu0 0.0
  %744 = vmatpush1.msra.mxu0 %v708
  %745 = vmatprep.subr.mxu0 0.0
  %746 = vmatpush1.msra.mxu0 %v709
  %747 = vmatprep.subr.mxu0 0.0
  %748 = vmatpush1.msra.mxu0 %v710
  %749 = vmatprep.subr.mxu0 0.0
  %750 = vmatpush1.msra.mxu0 %v711
  %751 = vmatprep.subr.mxu0 0.0
  %752 = vmatpush1.msra.mxu0 0.0
  %753 = vmatprep.subr.mxu0 0.0
  %754 = vmatpush1.msra.mxu0 0.0
  %755 = vmatprep.subr.mxu0 0.0
  %756 = vmatpush1.msra.mxu0 0.0
  %757 = vmatprep.subr.mxu0 0.0
  %758 = vmatpush1.msra.mxu0 0.0
  %759 = vmatprep.subr.mxu0 0.0
  %760 = vmatpush1.msra.mxu0 0.0
  %761 = vmatprep.subr.mxu0 0.0
  %762 = vmatpush1.msra.mxu0 0.0
  %763 = vmatprep.subr.mxu0 0.0
  %764 = vmatpush1.msra.mxu0 0.0
  %765 = vmatprep.subr.mxu0 0.0
  %766 = vmatpush1.msra.mxu0 0.0
  %767 = vmatprep.subr.mxu0 0.0
  %768 = vmatpush1.msra.mxu0 0.0
  %769 = vmatprep.subr.mxu0 0.0
  %770 = vmatpush1.msra.mxu0 0.0
  %771 = vmatprep.subr.mxu0 0.0
  %772 = vmatpush1.msra.mxu0 0.0
  %773 = vmatprep.subr.mxu0 0.0
  %774 = vmatpush1.msra.mxu0 0.0
  %775 = vmatprep.subr.mxu0 0.0
  %776 = vmatpush1.msra.mxu0 0.0
  %777 = vmatprep.subr.mxu0 0.0
  %778 = vmatpush1.msra.mxu0 0.0
  %779 = vmatprep.subr.mxu0 0.0
  %780 = vmatpush1.msra.mxu0 0.0
  %781 = vmatprep.subr.mxu0 0.0
  %782 = vmatpush1.msra.mxu0 0.0
  %783 = vmatprep.mubr.f32.mxu0 0.0
  %784 = vmatmul.mubr.f32.gmra.mrb[0].mxu0 %v680
  %v785 = vpop.f32.mrb[0].mxu0
  %v786 = vadd.f32 %v717, %v785
  %v787 = vpop.f32.mrb[0].mxu0
  %788 = vmatprep.mubr.f32.mxu0 0.0
  %789 = vmatmul.mubr.f32.gmra.mrb[0].mxu0 %v681
  %v790 = vpop.f32.mrb[0].mxu0
  %v791 = vadd.f32 %v717, %v790
  %v792 = vpop.f32.mrb[0].mxu0
  %793 = vmatprep.mubr.f32.mxu0 0.0
  %794 = vmatmul.mubr.f32.gmra.mrb[0].mxu0 %v682
  %v795 = vpop.f32.mrb[0].mxu0
  %v796 = vadd.f32 %v717, %v795
  %v797 = vpop.f32.mrb[0].mxu0
  %798 = vmatprep.mubr.f32.mxu0 0.0
  %799 = vmatmul.mubr.f32.gmra.mrb[0].mxu0 %v683
  %v800 = vpop.f32.mrb[0].mxu0
  %v801 = vadd.f32 %v717, %v800
  %v802 = vpop.f32.mrb[0].mxu0
  %803 = vmatprep.mubr.f32.mxu0 0.0
  %804 = vmatmul.mubr.f32.gmra.mrb[0].mxu0 %v684
  %v805 = vpop.f32.mrb[0].mxu0
  %v806 = vadd.f32 %v717, %v805
  %v807 = vpop.f32.mrb[0].mxu0
  %808 = vmatprep.mubr.f32.mxu0 0.0
  %809 = vmatmul.mubr.f32.gmra.mrb[0].mxu0 %v685
  %v810 = vpop.f32.mrb[0].mxu0
  %v811 = vadd.f32 %v717, %v810
  %v812 = vpop.f32.mrb[0].mxu0
  %813 = vmatprep.mubr.f32.mxu0 0.0
  %814 = vmatmul.mubr.f32.gmra.mrb[0].mxu0 %v686
  %v815 = vpop.f32.mrb[0].mxu0
  %v816 = vadd.f32 %v717, %v815
  %v817 = vpop.f32.mrb[0].mxu0
  %818 = vmatprep.mubr.f32.mxu0 0.0
  %819 = vmatmul.mubr.f32.gmra.mrb[0].mxu0 %v687
  %v820 = vpop.f32.mrb[0].mxu0
  %v821 = vadd.f32 %v717, %v820
  %v822 = vpop.f32.mrb[0].mxu0
  %823 = vmatprep.mubr.f32.mxu0 0.0
  %824 = vmatmul.mubr.f32.gmra.mrb[0].mxu0 %v688
  %v825 = vpop.f32.mrb[0].mxu0
  %v826 = vadd.f32 %v717, %v825
  %v827 = vpop.f32.mrb[0].mxu0
  %828 = vmatprep.mubr.f32.mxu0 0.0
  %829 = vmatmul.mubr.f32.gmra.mrb[0].mxu0 %v689
  %v830 = vpop.f32.mrb[0].mxu0
  %v831 = vadd.f32 %v717, %v830
  %v832 = vpop.f32.mrb[0].mxu0
  %833 = vmatprep.mubr.f32.mxu0 0.0
  %834 = vmatmul.mubr.f32.gmra.mrb[0].mxu0 %v690
  %v835 = vpop.f32.mrb[0].mxu0
  %v836 = vadd.f32 %v717, %v835
  %v837 = vpop.f32.mrb[0].mxu0
  %838 = vmatprep.mubr.f32.mxu0 0.0
  %839 = vmatmul.mubr.f32.gmra.mrb[0].mxu0 %v691
  %v840 = vpop.f32.mrb[0].mxu0
  %v841 = vadd.f32 %v717, %v840
  %v842 = vpop.f32.mrb[0].mxu0
  %843 = vmatprep.mubr.f32.mxu0 0.0
  %844 = vmatmul.mubr.f32.gmra.mrb[0].mxu0 %v692
  %v845 = vpop.f32.mrb[0].mxu0
  %v846 = vadd.f32 %v717, %v845
  %v847 = vpop.f32.mrb[0].mxu0
  %848 = vmatprep.mubr.f32.mxu0 0.0
  %849 = vmatmul.mubr.f32.gmra.mrb[0].mxu0 %v693
  %v850 = vpop.f32.mrb[0].mxu0
  %v851 = vadd.f32 %v717, %v850
  %v852 = vpop.f32.mrb[0].mxu0
  %853 = vmatprep.mubr.f32.mxu0 0.0
  %854 = vmatmul.mubr.f32.gmra.mrb[0].mxu0 %v694
  %v855 = vpop.f32.mrb[0].mxu0
  %v856 = vadd.f32 %v717, %v855
  %v857 = vpop.f32.mrb[0].mxu0
  %858 = vmatprep.mubr.f32.mxu0 0.0
  %859 = vmatmul.mubr.f32.gmra.mrb[0].mxu0 %v695
  %v860 = vpop.f32.mrb[0].mxu0
  %v861 = vadd.f32 %v717, %v860
  %v862 = vpop.f32.mrb[0].mxu0
  %863 = vdwg.mxu0
  %864 = vxpose.xlu0.b32.start [1/16] %v786, 128
  %865 = vxpose.xlu0.b32.cont [2/16] %v791, 128
  %866 = vxpose.xlu0.b32.cont [3/16] %v796, 128
  %867 = vxpose.xlu0.b32.cont [4/16] %v801, 128
  %868 = vxpose.xlu0.b32.cont [5/16] %v806, 128
  %869 = vxpose.xlu0.b32.cont [6/16] %v811, 128
  %870 = vxpose.xlu0.b32.cont [7/16] %v816, 128
  %871 = vxpose.xlu0.b32.cont [8/16] %v821, 128
  %872 = vxpose.xlu0.b32.cont [9/16] %v826, 128
  %873 = vxpose.xlu0.b32.cont [10/16] %v831, 128
  %874 = vxpose.xlu0.b32.cont [11/16] %v836, 128
  %875 = vxpose.xlu0.b32.cont [12/16] %v841, 128
  %876 = vxpose.xlu0.b32.cont [13/16] %v846, 128
  %877 = vxpose.xlu0.b32.cont [14/16] %v851, 128
  %878 = vxpose.xlu0.b32.cont [15/16] %v856, 128
  %879 = vxpose.xlu0.b32.end [16/16] %v861, 128
  %v880 = vpop.trf.xlu0
  %v881 = vpop.trf.xlu0
  %v882 = vpop.trf.xlu0
  %v883 = vpop.trf.xlu0
  %v884 = vpop.trf.xlu0
  %v885 = vpop.trf.xlu0
  %v886 = vpop.trf.xlu0
  %v887 = vpop.trf.xlu0
  %v888 = vpop.trf.xlu0
  %v889 = vpop.trf.xlu0
  %v890 = vpop.trf.xlu0
  %v891 = vpop.trf.xlu0
  %v892 = vpop.trf.xlu0
  %v893 = vpop.trf.xlu0
  %v894 = vpop.trf.xlu0
  %v895 = vpop.trf.xlu0
  %v896 = vsub.f32 0.0, %v880
  %v897 = vmul.f32 %v896, 1.442695
  %v898 = vpow.pop %v897
  %v899 = vadd.f32 %v898, 1.0
  %v900 = vrcp.pop %v899
  %901 = vst [vmem:[%s9] sm:$0x1] %v900
  // Predicated region
  $region38: #{discriminator_forward.1} parent=0 // pred_check
    _
  $region39: #{discriminator_forward.1} parent=0 // pred_check_branch
    %903 = sbr.rel (0) target = $region41
  $region40: #{discriminator_forward.1} parent=0 // pred_region
    _
  $region41: #{discriminator_forward.1} parent=0 // pred_fallthru
    _
  // Predicated region
  $region42: #{discriminator_forward.1} parent=0 // pred_check
    _
  $region43: #{discriminator_forward.1} parent=0 // pred_check_branch
    %905 = sbr.rel (0) target = $region45
  $region44: #{discriminator_forward.1} parent=0 // pred_region
    _
  $region45: #{discriminator_forward.1} parent=0 // pred_fallthru
    _

</llo_original>
